<compile_context>
chip_gen: v7x
topology: tpu7x:2x2x1
jax: 0.10.0
libtpu: 0.0.40
codegen_flags: <defaults>
</compile_context>

<pallas_src>
import functools

import jax
import jax.numpy as jnp
from jax.experimental import pallas as pl
from jax.experimental.pallas import tpu as pltpu

_LN_EPS = 1e-4  # glow-tts channel-LayerNorm eps


# ----------------------------- kernel helpers ------------------------------ #
def _conv_relu_ln(x_bf16, w_ref, b_ref, g_ref, be_ref, *, k_taps):
    """K-tap 'valid' conv over the lane (time) axis + ReLU + channel LayerNorm.

    x_bf16 : [Ci, L] bf16, already masked (channels on sublanes, time on lanes).
    w_ref  : [Co, K*Ci] bf16, tap-major (w_ref[:, k*Ci:(k+1)*Ci] == torch_w[:, :, k]).
    b_ref, g_ref, be_ref : [Co, 1] f32.
    returns: [Co, L - (K-1)] f32.
    """
    _, l = x_bf16.shape
    out_len = l - (k_taps - 1)
    # Static lane slices of the haloed window, stacked on sublanes so the whole conv
    # is a single MXU matmul.  Built directly in bf16 (no f32 staging copy).
    taps = [x_bf16[:, k:k + out_len] for k in range(k_taps)]
    stacked = jnp.concatenate(taps, axis=0)                        # [K*Ci, out_len] bf16
    h = jnp.dot(w_ref[...], stacked, preferred_element_type=jnp.float32)
    h = jnp.maximum(h + b_ref[...], 0.0)
    # Channel LayerNorm (over sublanes) with fused one-pass statistics.
    inv_c = 1.0 / h.shape[0]
    s1 = jnp.sum(h, axis=0, keepdims=True) * inv_c
    s2 = jnp.sum(h * h, axis=0, keepdims=True) * inv_c
    var = jnp.maximum(s2 - s1 * s1, 0.0)
    hn = (h - s1) * jax.lax.rsqrt(var + _LN_EPS)
    return hn * g_ref[...] + be_ref[...]


def _duration_predictor_kernel(len_ref,
                               xb_ref, xe_ref,
                               w1_ref, b1_ref, g1_ref, be1_ref,
                               w2_ref, b2_ref, g2_ref, be2_ref,
                               wp_ref, bp_ref,
                               o_ref, *, k_taps, pad, t_tile):
    halo = 2 * pad                        # per-side halo for the two stacked convs
    b = pl.program_id(0)
    t0 = pl.program_id(1) * t_tile        # global time offset of this output tile
    length = len_ref[b]                   # valid sequence length (SMEM scalar)

    # Assemble the haloed input window [Cin, t_tile + 2*halo] from the lane-dense
    # body block plus the tiny precomputed edge columns (all bf16).
    xb = xb_ref[0]                        # [Cin, t_tile]   bf16
    xe = xe_ref[0, 0]                     # [Cin, 2*halo]   bf16
    window = jnp.concatenate([xe[:, :halo], xb, xe[:, halo:]], axis=-1)

    # Mask rebuilt from the length scalar (no mask tensor streamed from HBM).
    w_len = t_tile + 2 * halo
    pos_w = jax.lax.broadcasted_iota(jnp.int32, (1, w_len), 1) + (t0 - halo)
    xw = jnp.where(pos_w < length, window, jnp.zeros((), window.dtype))

    # Conv block 1 (covers global [t0-pad, t0+t_tile+pad)).
    h1 = _conv_relu_ln(xw, w1_ref, b1_ref, g1_ref, be1_ref, k_taps=k_taps)

    # Mask the conv-2 input against the global sequence bounds; this also supplies the
    # reference conv's 'same' zero padding at t < 0 / t >= length.  Single bf16 cast.
    l1 = t_tile + 2 * pad
    pos_1 = jax.lax.broadcasted_iota(jnp.int32, (1, l1), 1) + (t0 - pad)
    valid_1 = jnp.logical_and(pos_1 >= 0, pos_1 < length)
    h1m = jnp.where(valid_1, h1, 0.0).astype(jnp.bfloat16)

    # Conv block 2 (covers exactly global [t0, t0 + t_tile)).
    h2 = _conv_relu_ln(h1m, w2_ref, b2_ref, g2_ref, be2_ref, k_taps=k_taps)

    # 1x1 projection F -> 1: VPU multiply + sublane reduce; the mask is applied AFTER
    # the reduce (identical math, saves a full [F, t_tile] multiply).  Lane-dense store.
    pos_o = jax.lax.broadcasted_iota(jnp.int32, (1, t_tile), 1) + t0
    proj = jnp.sum(h2 * wp_ref[...], axis=0, keepdims=True)
    mask_o = (pos_o < length).astype(jnp.float32)
    o_ref[0] = (mask_o * proj + bp_ref[...]).astype(o_ref.dtype)


# ------------------------------- wrapper ----------------------------------- #
def duration_predictor_forward(x_nct, lengths, params, *, t_tile=512):
    """x_nct: [B, Cin, T] (PyTorch NCT layout), lengths: [B] int32 -> [B, 1, T] f32.

    `lengths` replaces the glowTTS prefix mask (x_mask[b, 0, t] == (t < lengths[b])),
    so no [B, 1, T] mask tensor has to be streamed through HBM.
    """
    B, Cin, T = x_nct.shape
    F, _, K = params["w1"].shape
    assert K % 2 == 1, "padding=K//2 'same' conv requires an odd filter_size"
    pad = K // 2
    halo = 2 * pad

    # Time tile: multiple of 128 (lane-dense output stores; (8,128) block constraint).
    tt = max(128, (int(t_tile) // 128) * 128)
    nt = pl.cdiv(T, tt)
    t_ceil = nt * tt

    # Inputs stream as bf16 (halves the dominant HBM->VMEM DMA vs f32).
    xb = x_nct.astype(jnp.bfloat16)
    if t_ceil != T:
        xb = jnp.pad(xb, ((0, 0), (0, 0), (0, t_ceil - T)))
    # Tiny per-tile halo columns [B, nt, Cin, 2*halo]; the body streams un-duplicated.
    xp = jnp.pad(xb, ((0, 0), (0, 0), (halo, halo)))
    starts = jnp.arange(nt, dtype=jnp.int32) * tt
    off = jnp.arange(halo, dtype=jnp.int32)
    idx = jnp.concatenate([starts[:, None] + off[None, :],
                           starts[:, None] + (tt + halo) + off[None, :]], axis=1)
    edges = jnp.take(xp, idx.reshape(-1), axis=2)                  # [B, Cin, nt*2*halo]
    edges = edges.reshape(B, Cin, nt, 2 * halo).transpose(0, 2, 1, 3)

    # Fused tap-major conv weights [Co, K*Ci] in bf16 (MXU operands); vectors in f32.
    w1f = jnp.transpose(params["w1"], (0, 2, 1)).reshape(F, K * Cin).astype(jnp.bfloat16)
    w2f = jnp.transpose(params["w2"], (0, 2, 1)).reshape(F, K * F).astype(jnp.bfloat16)
    b1 = params["b1"].reshape(F, 1).astype(jnp.float32)
    b2 = params["b2"].reshape(F, 1).astype(jnp.float32)
    g1 = params["g1"].reshape(F, 1).astype(jnp.float32)
    be1 = params["be1"].reshape(F, 1).astype(jnp.float32)
    g2 = params["g2"].reshape(F, 1).astype(jnp.float32)
    be2 = params["be2"].reshape(F, 1).astype(jnp.float32)
    wp = params["wp"].reshape(F, 1).astype(jnp.float32)   # used on the VPU, keep f32
    bp = params["bp"].reshape(1, 1).astype(jnp.float32)
    lengths = jnp.asarray(lengths, jnp.int32).reshape(B)

    # Per-step VMEM estimate (double-buffered streamed blocks + in-kernel temporaries),
    # with 2x headroom, so double-buffering survives on v5e / v6e / v7x scoped limits.
    est = (
        2 * Cin * tt * 2                        # x body block (bf16), x2 buffers
        + 2 * Cin * 2 * halo * 2                # halo block
        + 2 * tt * 4                            # output block (f32), x2 buffers
        + 2 * (K * Cin + K * F + 10) * F * 4    # weights / vectors (conservative)
        + Cin * (tt + 2 * halo) * 2             # assembled window (bf16)
        + K * Cin * (tt + 2 * pad) * 2          # conv-1 tap stack (bf16)
        + 4 * F * (tt + 2 * pad) * 4            # conv-1 activations / LN temps (f32)
        + K * F * tt * 2                        # conv-2 tap stack (bf16)
        + 4 * F * tt * 4                        # conv-2 activations / LN temps (f32)
    )
    vmem_limit = int(min(100 * 2 ** 20, max(32 * 2 ** 20, 2 * est)))

    def rep(shape):
        nd = len(shape)
        return pl.BlockSpec(shape, lambda b, t, lens, _nd=nd: (0,) * _nd)

    grid_spec = pltpu.PrefetchScalarGridSpec(
        num_scalar_prefetch=1,                 # lengths[B] -> SMEM
        grid=(B, nt),
        in_specs=[
            pl.BlockSpec((1, Cin, tt), lambda b, t, lens: (b, 0, t)),             # x body
            pl.BlockSpec((1, 1, Cin, 2 * halo), lambda b, t, lens: (b, t, 0, 0)),  # halos
            rep(w1f.shape), rep(b1.shape), rep(g1.shape), rep(be1.shape),
            rep(w2f.shape), rep(b2.shape), rep(g2.shape), rep(be2.shape),
            rep(wp.shape), rep(bp.shape),
        ],
        out_specs=pl.BlockSpec((1, 1, tt), lambda b, t, lens: (b, 0, t)),
    )

    kernel = functools.partial(_duration_predictor_kernel, k_taps=K, pad=pad, t_tile=tt)

    out = pl.pallas_call(
        kernel,
        out_shape=jax.ShapeDtypeStruct((B, 1, t_ceil), jnp.float32),
        grid_spec=grid_spec,
        compiler_params=pltpu.CompilerParams(
            dimension_semantics=("parallel", "parallel"),
            vmem_limit_bytes=vmem_limit),
    )(lengths, xb, edges, w1f, b1, g1, be1, w2f, b2, g2, be2, wp, bp)

    return out[:, :, :T]


# --------------------------- pure-JAX reference ----------------------------- #
def reference_forward(x, x_mask, params):
    def conv1d(h, w, b, pad):
        out = jax.lax.conv_general_dilated(
            h, w, window_strides=(1,), padding=[(pad, pad)],
            dimension_numbers=("NCH", "OIH", "NCH"))
        return out + b[None, :, None]

    def ln(h, g, be):
        mean = jnp.mean(h, axis=1, keepdims=True)
        var = jnp.mean((h - mean) ** 2, axis=1, keepdims=True)
        hn = (h - mean) * jax.lax.rsqrt(var + _LN_EPS)
        return hn * g[None, :, None] + be[None, :, None]

    K = params["w1"].shape[2]
    pad = (K - 1) // 2
    h = conv1d(x * x_mask, params["w1"], params["b1"], pad)
    h = ln(jax.nn.relu(h), params["g1"], params["be1"])
    h = conv1d(h * x_mask, params["w2"], params["b2"], pad)
    h = ln(jax.nn.relu(h), params["g2"], params["be2"])
    return conv1d(h * x_mask, params["wp"], params["bp"], 0)


# ---------------------------------- main ------------------------------------ #
if __name__ == "__main__":
    B, Cin, F, K, T = 2, 16, 32, 3, 256

    key = jax.random.PRNGKey(0)
    ks = jax.random.split(key, 11)

    params = {
        "w1": 0.1 * jax.random.normal(ks[0], (F, Cin, K), jnp.float32),
        "b1": 0.1 * jax.random.normal(ks[1], (F,), jnp.float32),
        "g1": 1.0 + 0.1 * jax.random.normal(ks[2], (F,), jnp.float32),
        "be1": 0.1 * jax.random.normal(ks[3], (F,), jnp.float32),
        "w2": 0.1 * jax.random.normal(ks[4], (F, F, K), jnp.float32),
        "b2": 0.1 * jax.random.normal(ks[5], (F,), jnp.float32),
        "g2": 1.0 + 0.1 * jax.random.normal(ks[6], (F,), jnp.float32),
        "be2": 0.1 * jax.random.normal(ks[7], (F,), jnp.float32),
        "wp": 0.1 * jax.random.normal(ks[8], (1, F, 1), jnp.float32),
        "bp": 0.1 * jax.random.normal(ks[9], (1,), jnp.float32),
    }

    x = jax.random.normal(ks[10], (B, Cin, T), jnp.float32)
    lengths = jnp.array([T, 100], jnp.int32)           # exercises partial & empty tiles
    x_mask = (jnp.arange(T)[None, None, :] < lengths[:, None, None]).astype(jnp.float32)

    # t_tile=128 -> grid (B=2, nt=2): tiling, halos and masking all exercised.
    out = jax.block_until_ready(
        duration_predictor_forward(x, lengths, params, t_tile=128))
    ref = reference_forward(x, x_mask, params)

    assert out.shape == (B, 1, T), out.shape
    assert bool(jnp.all(jnp.isfinite(out)))
    # Kernel uses bf16 MXU operands / bf16 input (f32 accumulation); the reference is
    # pure f32, hence the slightly relaxed tolerance.
    max_err = float(jnp.max(jnp.abs(out - ref)))
    assert bool(jnp.allclose(out, ref, atol=5e-2, rtol=5e-2)), max_err

    print("KERNEL_OK")
</pallas_src>

<mosaic_0001>
module attributes {stable_mosaic.version = 11 : i64} {
  func.func @_duration_predictor_kernel(%arg0: i32, %arg1: i32, %arg2: memref<2xi32, #tpu.memory_space<smem>>, %arg3: memref<1x16x128xbf16, #tpu.memory_space<vmem>>, %arg4: memref<1x1x16x4xbf16, #tpu.memory_space<vmem>>, %arg5: memref<32x48xbf16, #tpu.memory_space<vmem>>, %arg6: memref<32x1xf32, #tpu.memory_space<vmem>>, %arg7: memref<32x1xf32, #tpu.memory_space<vmem>>, %arg8: memref<32x1xf32, #tpu.memory_space<vmem>>, %arg9: memref<32x96xbf16, #tpu.memory_space<vmem>>, %arg10: memref<32x1xf32, #tpu.memory_space<vmem>>, %arg11: memref<32x1xf32, #tpu.memory_space<vmem>>, %arg12: memref<32x1xf32, #tpu.memory_space<vmem>>, %arg13: memref<32x1xf32, #tpu.memory_space<vmem>>, %arg14: memref<1x1xf32, #tpu.memory_space<vmem>>, %arg15: memref<1x1x128xf32, #tpu.memory_space<vmem>>) attributes {dimension_semantics = [#tpu.dimension_semantics<parallel>, #tpu.dimension_semantics<parallel>], iteration_bounds = array<i64: 2, 2>, scalar_prefetch = 1 : i64, scratch_operands = 0 : i64, tpu.core_type = #tpu.core_type<tc>, window_params = [{transform_indices = @transform_0, window_bounds = array<i64: 1, 16, 128>}, {transform_indices = @transform_1, window_bounds = array<i64: 1, 1, 16, 4>}, {pipeline_mode = #tpu.pipeline_mode<synchronous>, transform_indices = @transform_2, window_bounds = array<i64: 32, 48>}, {pipeline_mode = #tpu.pipeline_mode<synchronous>, transform_indices = @transform_3, window_bounds = array<i64: 32, 1>}, {pipeline_mode = #tpu.pipeline_mode<synchronous>, transform_indices = @transform_4, window_bounds = array<i64: 32, 1>}, {pipeline_mode = #tpu.pipeline_mode<synchronous>, transform_indices = @transform_5, window_bounds = array<i64: 32, 1>}, {pipeline_mode = #tpu.pipeline_mode<synchronous>, transform_indices = @transform_6, window_bounds = array<i64: 32, 96>}, {pipeline_mode = #tpu.pipeline_mode<synchronous>, transform_indices = @transform_7, window_bounds = array<i64: 32, 1>}, {pipeline_mode = #tpu.pipeline_mode<synchronous>, transform_indices = @transform_8, window_bounds = array<i64: 32, 1>}, {pipeline_mode = #tpu.pipeline_mode<synchronous>, transform_indices = @transform_9, window_bounds = array<i64: 32, 1>}, {pipeline_mode = #tpu.pipeline_mode<synchronous>, transform_indices = @transform_10, window_bounds = array<i64: 32, 1>}, {pipeline_mode = #tpu.pipeline_mode<synchronous>, transform_indices = @transform_11, window_bounds = array<i64: 1, 1>}, {transform_indices = @transform_12, window_bounds = array<i64: 1, 1, 128>}]} {
    %c128_i32 = arith.constant 128 : i32
    %0 = arith.muli %arg1, %c128_i32 : i32
    %1 = arith.index_cast %arg0 : i32 to index
    %2 = memref.load %arg2[%1] : memref<2xi32, #tpu.memory_space<smem>>
    %c0 = arith.constant 0 : index
    %c0_0 = arith.constant 0 : index
    %c0_1 = arith.constant 0 : index
    %3 = vector.load %arg3[%c0, %c0_0, %c0_1] : memref<1x16x128xbf16, #tpu.memory_space<vmem>>, vector<1x16x128xbf16>
    %4 = vector.shape_cast %3 : vector<1x16x128xbf16> to vector<16x128xbf16>
    %c0_2 = arith.constant 0 : index
    %c0_3 = arith.constant 0 : index
    %c0_4 = arith.constant 0 : index
    %c0_5 = arith.constant 0 : index
    %5 = vector.load %arg4[%c0_2, %c0_3, %c0_4, %c0_5] : memref<1x1x16x4xbf16, #tpu.memory_space<vmem>>, vector<1x1x16x4xbf16>
    %6 = vector.shape_cast %5 : vector<1x1x16x4xbf16> to vector<16x4xbf16>
    %7 = vector.extract_strided_slice %6 {offsets = [0, 0], sizes = [16, 2], strides = [1, 1]} : vector<16x4xbf16> to vector<16x2xbf16>
    %8 = vector.extract_strided_slice %6 {offsets = [0, 2], sizes = [16, 2], strides = [1, 1]} : vector<16x4xbf16> to vector<16x2xbf16>
    %9 = tpu.concatenate %7, %4, %8 in 1 : vector<16x2xbf16>, vector<16x128xbf16>, vector<16x2xbf16> -> vector<16x132xbf16>
    %10 = tpu.iota {dimensions = array<i32: 1>} : vector<1x132xi32>
    %c2_i32 = arith.constant 2 : i32
    %11 = arith.subi %0, %c2_i32 : i32
    %12 = vector.broadcast %11 : i32 to vector<1x132xi32>
    %13 = arith.addi %10, %12 : vector<1x132xi32>
    %14 = vector.broadcast %2 : i32 to vector<1x132xi32>
    %15 = arith.cmpi slt, %13, %14 : vector<1x132xi32>
    %cst = arith.constant 0.000000e+00 : bf16
    %16 = vector.shape_cast %15 : vector<1x132xi1> to vector<1x132xi1>
    %17 = vector.broadcast %16 : vector<1x132xi1> to vector<16x132xi1>
    %18 = vector.broadcast %cst : bf16 to vector<16x132xbf16>
    %19 = arith.select %17, %9, %18 : vector<16x132xi1>, vector<16x132xbf16>
    %20 = vector.extract_strided_slice %19 {offsets = [0, 0], sizes = [16, 130], strides = [1, 1]} : vector<16x132xbf16> to vector<16x130xbf16>
    %21 = vector.extract_strided_slice %19 {offsets = [0, 1], sizes = [16, 130], strides = [1, 1]} : vector<16x132xbf16> to vector<16x130xbf16>
    %22 = vector.extract_strided_slice %19 {offsets = [0, 2], sizes = [16, 130], strides = [1, 1]} : vector<16x132xbf16> to vector<16x130xbf16>
    %23 = tpu.concatenate %20, %21, %22 in 0 : vector<16x130xbf16>, vector<16x130xbf16>, vector<16x130xbf16> -> vector<48x130xbf16>
    %c0_6 = arith.constant 0 : index
    %c0_7 = arith.constant 0 : index
    %24 = vector.load %arg5[%c0_6, %c0_7] : memref<32x48xbf16, #tpu.memory_space<vmem>>, vector<32x48xbf16>
    %cst_8 = arith.constant dense<0.000000e+00> : vector<32x130xf32>
    %25 = tpu.matmul %24, %23, %cst_8 {dimension_numbers = #tpu.dot_dimension_numbers<[1], [0], [0], [1], [0, 0, 1, 1], [], []>} : vector<32x48xbf16>, vector<48x130xbf16>, vector<32x130xf32> -> vector<32x130xf32>
    %c0_9 = arith.constant 0 : index
    %c0_10 = arith.constant 0 : index
    %26 = vector.load %arg6[%c0_9, %c0_10] : memref<32x1xf32, #tpu.memory_space<vmem>>, vector<32x1xf32>
    %27 = vector.broadcast %26 : vector<32x1xf32> to vector<32x130xf32>
    %28 = arith.addf %25, %27 : vector<32x130xf32>
    %cst_11 = arith.constant 0.000000e+00 : f32
    %29 = vector.broadcast %cst_11 : f32 to vector<32x130xf32>
    %30 = arith.maximumf %28, %29 : vector<32x130xf32>
    %cst_12 = arith.constant dense<0.000000e+00> : vector<130xf32>
    %31 = vector.multi_reduction <add>, %30, %cst_12 [0] : vector<32x130xf32> to vector<130xf32>
    %32 = vector.shape_cast %31 : vector<130xf32> to vector<1x130xf32>
    %cst_13 = arith.constant 3.125000e-02 : f32
    %33 = vector.broadcast %cst_13 : f32 to vector<1x130xf32>
    %34 = arith.mulf %32, %33 : vector<1x130xf32>
    %35 = arith.mulf %30, %30 : vector<32x130xf32>
    %cst_14 = arith.constant dense<0.000000e+00> : vector<130xf32>
    %36 = vector.multi_reduction <add>, %35, %cst_14 [0] : vector<32x130xf32> to vector<130xf32>
    %37 = vector.shape_cast %36 : vector<130xf32> to vector<1x130xf32>
    %cst_15 = arith.constant 3.125000e-02 : f32
    %38 = vector.broadcast %cst_15 : f32 to vector<1x130xf32>
    %39 = arith.mulf %37, %38 : vector<1x130xf32>
    %40 = arith.mulf %34, %34 : vector<1x130xf32>
    %41 = arith.subf %39, %40 : vector<1x130xf32>
    %cst_16 = arith.constant 0.000000e+00 : f32
    %42 = vector.broadcast %cst_16 : f32 to vector<1x130xf32>
    %43 = arith.maximumf %41, %42 : vector<1x130xf32>
    %44 = vector.broadcast %34 : vector<1x130xf32> to vector<32x130xf32>
    %45 = arith.subf %30, %44 : vector<32x130xf32>
    %cst_17 = arith.constant 9.99999974E-5 : f32
    %46 = vector.broadcast %cst_17 : f32 to vector<1x130xf32>
    %47 = arith.addf %43, %46 : vector<1x130xf32>
    %48 = math.rsqrt %47 : vector<1x130xf32>
    %49 = vector.broadcast %48 : vector<1x130xf32> to vector<32x130xf32>
    %50 = arith.mulf %45, %49 : vector<32x130xf32>
    %c0_18 = arith.constant 0 : index
    %c0_19 = arith.constant 0 : index
    %51 = vector.load %arg7[%c0_18, %c0_19] : memref<32x1xf32, #tpu.memory_space<vmem>>, vector<32x1xf32>
    %52 = vector.broadcast %51 : vector<32x1xf32> to vector<32x130xf32>
    %53 = arith.mulf %50, %52 : vector<32x130xf32>
    %c0_20 = arith.constant 0 : index
    %c0_21 = arith.constant 0 : index
    %54 = vector.load %arg8[%c0_20, %c0_21] : memref<32x1xf32, #tpu.memory_space<vmem>>, vector<32x1xf32>
    %55 = vector.broadcast %54 : vector<32x1xf32> to vector<32x130xf32>
    %56 = arith.addf %53, %55 : vector<32x130xf32>
    %57 = tpu.iota {dimensions = array<i32: 1>} : vector<1x130xi32>
    %c1_i32 = arith.constant 1 : i32
    %58 = arith.subi %0, %c1_i32 : i32
    %59 = vector.broadcast %58 : i32 to vector<1x130xi32>
    %60 = arith.addi %57, %59 : vector<1x130xi32>
    %c0_i32 = arith.constant 0 : i32
    %61 = vector.broadcast %c0_i32 : i32 to vector<1x130xi32>
    %62 = arith.cmpi sge, %60, %61 : vector<1x130xi32>
    %63 = vector.broadcast %2 : i32 to vector<1x130xi32>
    %64 = arith.cmpi slt, %60, %63 : vector<1x130xi32>
    %65 = arith.andi %62, %64 : vector<1x130xi1>
    %cst_22 = arith.constant 0.000000e+00 : f32
    %66 = vector.shape_cast %65 : vector<1x130xi1> to vector<1x130xi1>
    %67 = vector.broadcast %66 : vector<1x130xi1> to vector<32x130xi1>
    %68 = vector.broadcast %cst_22 : f32 to vector<32x130xf32>
    %69 = arith.select %67, %56, %68 : vector<32x130xi1>, vector<32x130xf32>
    %70 = arith.truncf %69 : vector<32x130xf32> to vector<32x130xbf16>
    %71 = vector.extract_strided_slice %70 {offsets = [0, 0], sizes = [32, 128], strides = [1, 1]} : vector<32x130xbf16> to vector<32x128xbf16>
    %72 = vector.extract_strided_slice %70 {offsets = [0, 1], sizes = [32, 128], strides = [1, 1]} : vector<32x130xbf16> to vector<32x128xbf16>
    %73 = vector.extract_strided_slice %70 {offsets = [0, 2], sizes = [32, 128], strides = [1, 1]} : vector<32x130xbf16> to vector<32x128xbf16>
    %74 = tpu.concatenate %71, %72, %73 in 0 : vector<32x128xbf16>, vector<32x128xbf16>, vector<32x128xbf16> -> vector<96x128xbf16>
    %c0_23 = arith.constant 0 : index
    %c0_24 = arith.constant 0 : index
    %75 = vector.load %arg9[%c0_23, %c0_24] : memref<32x96xbf16, #tpu.memory_space<vmem>>, vector<32x96xbf16>
    %cst_25 = arith.constant dense<0.000000e+00> : vector<32x128xf32>
    %76 = tpu.matmul %75, %74, %cst_25 {dimension_numbers = #tpu.dot_dimension_numbers<[1], [0], [0], [1], [0, 0, 1, 1], [], []>} : vector<32x96xbf16>, vector<96x128xbf16>, vector<32x128xf32> -> vector<32x128xf32>
    %c0_26 = arith.constant 0 : index
    %c0_27 = arith.constant 0 : index
    %77 = vector.load %arg10[%c0_26, %c0_27] : memref<32x1xf32, #tpu.memory_space<vmem>>, vector<32x1xf32>
    %78 = vector.broadcast %77 : vector<32x1xf32> to vector<32x128xf32>
    %79 = arith.addf %76, %78 : vector<32x128xf32>
    %cst_28 = arith.constant 0.000000e+00 : f32
    %80 = vector.broadcast %cst_28 : f32 to vector<32x128xf32>
    %81 = arith.maximumf %79, %80 : vector<32x128xf32>
    %cst_29 = arith.constant dense<0.000000e+00> : vector<128xf32>
    %82 = vector.multi_reduction <add>, %81, %cst_29 [0] : vector<32x128xf32> to vector<128xf32>
    %83 = vector.shape_cast %82 : vector<128xf32> to vector<1x128xf32>
    %cst_30 = arith.constant 3.125000e-02 : f32
    %84 = vector.broadcast %cst_30 : f32 to vector<1x128xf32>
    %85 = arith.mulf %83, %84 : vector<1x128xf32>
    %86 = arith.mulf %81, %81 : vector<32x128xf32>
    %cst_31 = arith.constant dense<0.000000e+00> : vector<128xf32>
    %87 = vector.multi_reduction <add>, %86, %cst_31 [0] : vector<32x128xf32> to vector<128xf32>
    %88 = vector.shape_cast %87 : vector<128xf32> to vector<1x128xf32>
    %cst_32 = arith.constant 3.125000e-02 : f32
    %89 = vector.broadcast %cst_32 : f32 to vector<1x128xf32>
    %90 = arith.mulf %88, %89 : vector<1x128xf32>
    %91 = arith.mulf %85, %85 : vector<1x128xf32>
    %92 = arith.subf %90, %91 : vector<1x128xf32>
    %cst_33 = arith.constant 0.000000e+00 : f32
    %93 = vector.broadcast %cst_33 : f32 to vector<1x128xf32>
    %94 = arith.maximumf %92, %93 : vector<1x128xf32>
    %95 = vector.broadcast %85 : vector<1x128xf32> to vector<32x128xf32>
    %96 = arith.subf %81, %95 : vector<32x128xf32>
    %cst_34 = arith.constant 9.99999974E-5 : f32
    %97 = vector.broadcast %cst_34 : f32 to vector<1x128xf32>
    %98 = arith.addf %94, %97 : vector<1x128xf32>
    %99 = math.rsqrt %98 : vector<1x128xf32>
    %100 = vector.broadcast %99 : vector<1x128xf32> to vector<32x128xf32>
    %101 = arith.mulf %96, %100 : vector<32x128xf32>
    %c0_35 = arith.constant 0 : index
    %c0_36 = arith.constant 0 : index
    %102 = vector.load %arg11[%c0_35, %c0_36] : memref<32x1xf32, #tpu.memory_space<vmem>>, vector<32x1xf32>
    %103 = vector.broadcast %102 : vector<32x1xf32> to vector<32x128xf32>
    %104 = arith.mulf %101, %103 : vector<32x128xf32>
    %c0_37 = arith.constant 0 : index
    %c0_38 = arith.constant 0 : index
    %105 = vector.load %arg12[%c0_37, %c0_38] : memref<32x1xf32, #tpu.memory_space<vmem>>, vector<32x1xf32>
    %106 = vector.broadcast %105 : vector<32x1xf32> to vector<32x128xf32>
    %107 = arith.addf %104, %106 : vector<32x128xf32>
    %108 = tpu.iota {dimensions = array<i32: 1>} : vector<1x128xi32>
    %109 = vector.broadcast %0 : i32 to vector<1x128xi32>
    %110 = arith.addi %108, %109 : vector<1x128xi32>
    %c0_39 = arith.constant 0 : index
    %c0_40 = arith.constant 0 : index
    %111 = vector.load %arg13[%c0_39, %c0_40] : memref<32x1xf32, #tpu.memory_space<vmem>>, vector<32x1xf32>
    %112 = vector.broadcast %111 : vector<32x1xf32> to vector<32x128xf32>
    %113 = arith.mulf %107, %112 : vector<32x128xf32>
    %cst_41 = arith.constant dense<0.000000e+00> : vector<128xf32>
    %114 = vector.multi_reduction <add>, %113, %cst_41 [0] : vector<32x128xf32> to vector<128xf32>
    %115 = vector.shape_cast %114 : vector<128xf32> to vector<1x128xf32>
    %116 = vector.broadcast %2 : i32 to vector<1x128xi32>
    %117 = arith.cmpi slt, %110, %116 : vector<1x128xi32>
    %118 = arith.extui %117 : vector<1x128xi1> to vector<1x128xi32>
    %119 = arith.sitofp %118 : vector<1x128xi32> to vector<1x128xf32>
    %120 = arith.mulf %119, %115 : vector<1x128xf32>
    %c0_42 = arith.constant 0 : index
    %c0_43 = arith.constant 0 : index
    %121 = vector.load %arg14[%c0_42, %c0_43] : memref<1x1xf32, #tpu.memory_space<vmem>>, vector<1x1xf32>
    %122 = vector.broadcast %121 : vector<1x1xf32> to vector<1x128xf32>
    %123 = arith.addf %120, %122 : vector<1x128xf32>
    %c0_44 = arith.constant 0 : index
    %c0_45 = arith.constant 0 : index
    %c0_46 = arith.constant 0 : index
    %124 = vector.load %arg15[%c0_44, %c0_45, %c0_46] : memref<1x1x128xf32, #tpu.memory_space<vmem>>, vector<1x1x128xf32>
    %125 = vector.shape_cast %124 : vector<1x1x128xf32> to vector<1x128xf32>
    %126 = vector.shape_cast %123 : vector<1x128xf32> to vector<1x1x128xf32>
    tpu.vector_store %arg15[%c0_44, %c0_45, %c0_46], %126 {strides = array<i32>} : memref<1x1x128xf32, #tpu.memory_space<vmem>>, vector<1x1x128xf32>,
    return
  }
  func.func @transform_0(%arg0: i32, %arg1: i32, %arg2: memref<2xi32, #tpu.memory_space<smem>>) -> (i32, i32, i32) {
    %c0_i32 = arith.constant 0 : i32
    %c0_i32_0 = arith.constant 0 : i32
    return %arg0, %c0_i32, %arg1 : i32, i32, i32
  }
  func.func @transform_1(%arg0: i32, %arg1: i32, %arg2: memref<2xi32, #tpu.memory_space<smem>>) -> (i32, i32, i32, i32) {
    %c0_i32 = arith.constant 0 : i32
    %c0_i32_0 = arith.constant 0 : i32
    %c0_i32_1 = arith.constant 0 : i32
    return %arg0, %arg1, %c0_i32, %c0_i32_0 : i32, i32, i32, i32
  }
  func.func @transform_2(%arg0: i32, %arg1: i32, %arg2: memref<2xi32, #tpu.memory_space<smem>>) -> (i32, i32) {
    %c0_i32 = arith.constant 0 : i32
    %c0_i32_0 = arith.constant 0 : i32
    %c0_i32_1 = arith.constant 0 : i32
    return %c0_i32, %c0_i32_0 : i32, i32
  }
  func.func @transform_3(%arg0: i32, %arg1: i32, %arg2: memref<2xi32, #tpu.memory_space<smem>>) -> (i32, i32) {
    %c0_i32 = arith.constant 0 : i32
    %c0_i32_0 = arith.constant 0 : i32
    %c0_i32_1 = arith.constant 0 : i32
    return %c0_i32, %c0_i32_0 : i32, i32
  }
  func.func @transform_4(%arg0: i32, %arg1: i32, %arg2: memref<2xi32, #tpu.memory_space<smem>>) -> (i32, i32) {
    %c0_i32 = arith.constant 0 : i32
    %c0_i32_0 = arith.constant 0 : i32
    %c0_i32_1 = arith.constant 0 : i32
    return %c0_i32, %c0_i32_0 : i32, i32
  }
  func.func @transform_5(%arg0: i32, %arg1: i32, %arg2: memref<2xi32, #tpu.memory_space<smem>>) -> (i32, i32) {
    %c0_i32 = arith.constant 0 : i32
    %c0_i32_0 = arith.constant 0 : i32
    %c0_i32_1 = arith.constant 0 : i32
    return %c0_i32, %c0_i32_0 : i32, i32
  }
  func.func @transform_6(%arg0: i32, %arg1: i32, %arg2: memref<2xi32, #tpu.memory_space<smem>>) -> (i32, i32) {
    %c0_i32 = arith.constant 0 : i32
    %c0_i32_0 = arith.constant 0 : i32
    %c0_i32_1 = arith.constant 0 : i32
    return %c0_i32, %c0_i32_0 : i32, i32
  }
  func.func @transform_7(%arg0: i32, %arg1: i32, %arg2: memref<2xi32, #tpu.memory_space<smem>>) -> (i32, i32) {
    %c0_i32 = arith.constant 0 : i32
    %c0_i32_0 = arith.constant 0 : i32
    %c0_i32_1 = arith.constant 0 : i32
    return %c0_i32, %c0_i32_0 : i32, i32
  }
  func.func @transform_8(%arg0: i32, %arg1: i32, %arg2: memref<2xi32, #tpu.memory_space<smem>>) -> (i32, i32) {
    %c0_i32 = arith.constant 0 : i32
    %c0_i32_0 = arith.constant 0 : i32
    %c0_i32_1 = arith.constant 0 : i32
    return %c0_i32, %c0_i32_0 : i32, i32
  }
  func.func @transform_9(%arg0: i32, %arg1: i32, %arg2: memref<2xi32, #tpu.memory_space<smem>>) -> (i32, i32) {
    %c0_i32 = arith.constant 0 : i32
    %c0_i32_0 = arith.constant 0 : i32
    %c0_i32_1 = arith.constant 0 : i32
    return %c0_i32, %c0_i32_0 : i32, i32
  }
  func.func @transform_10(%arg0: i32, %arg1: i32, %arg2: memref<2xi32, #tpu.memory_space<smem>>) -> (i32, i32) {
    %c0_i32 = arith.constant 0 : i32
    %c0_i32_0 = arith.constant 0 : i32
    %c0_i32_1 = arith.constant 0 : i32
    return %c0_i32, %c0_i32_0 : i32, i32
  }
  func.func @transform_11(%arg0: i32, %arg1: i32, %arg2: memref<2xi32, #tpu.memory_space<smem>>) -> (i32, i32) {
    %c0_i32 = arith.constant 0 : i32
    %c0_i32_0 = arith.constant 0 : i32
    %c0_i32_1 = arith.constant 0 : i32
    return %c0_i32, %c0_i32_0 : i32, i32
  }
  func.func @transform_12(%arg0: i32, %arg1: i32, %arg2: memref<2xi32, #tpu.memory_space<smem>>) -> (i32, i32, i32) {
    %c0_i32 = arith.constant 0 : i32
    %c0_i32_0 = arith.constant 0 : i32
    return %arg0, %c0_i32, %arg1 : i32, i32, i32
  }
}

</mosaic_0001>

<llo_original>
// kernel: tpu_custom_call.1
$region0: #{tpu_custom_call.1}
  #allocation0 [shape = 'u32[]', space=smem, size = 0x4, offset = 0x4, fixed_abs, tag = 'smem constant byte address 0x4 - core index']
  #allocation1 [shape = 'u32[144,128]{1,0:T(1,128)}', space=vmem, size = 0x12000, scoped, tag = 'internal scratch']
  #allocation2 [shape = 's32[1]{0}', space=sflag, size = 0x4, scoped, tag = 'scoped memory for tpu_custom_call.1']
  #allocation3 [shape = 'u8[512]{0}', space=smem, size = 0x200, scoped, tag = 'prefetched SMEM operand 0']
  #allocation4 [shape = 'f32[1,1]{1,0:T(1,128)S(1)}', space=vmem, size = 0x200, scoped, tag = 'scoped memory for tpu_custom_call.1']
  %s0 = inlined_call_operand.vmem [shape: s32[2], index: 0, kind: input, shape index: {}]
  %s1 = inlined_call_operand.vmem [shape: bf16[2,16,256], index: 1, kind: input, shape index: {}]
  %s2 = inlined_call_operand.vmem [shape: bf16[2,2,16,4], index: 2, kind: input, shape index: {}]
  %s3 = inlined_call_operand.vmem [shape: bf16[32,48], index: 3, kind: input, shape index: {}]
  %s4 = inlined_call_operand.vmem [shape: f32[32,1], index: 4, kind: input, shape index: {}]
  %s5 = inlined_call_operand.vmem [shape: f32[32,1], index: 5, kind: input, shape index: {}]
  %s6 = inlined_call_operand.vmem [shape: f32[32,1], index: 6, kind: input, shape index: {}]
  %s7 = inlined_call_operand.vmem [shape: bf16[32,96], index: 7, kind: input, shape index: {}]
  %s8 = inlined_call_operand.vmem [shape: f32[32,1], index: 8, kind: input, shape index: {}]
  %s9 = inlined_call_operand.vmem [shape: f32[32,1], index: 9, kind: input, shape index: {}]
  %s10 = inlined_call_operand.vmem [shape: f32[32,1], index: 10, kind: input, shape index: {}]
  %s11 = inlined_call_operand.vmem [shape: f32[32,1], index: 11, kind: input, shape index: {}]
  %s12 = inlined_call_operand.<no memory space> [shape: f32[1,1], index: 12, kind: input, shape index: {}]
  %s13 = inlined_call_operand.hbm [shape: f32[2,1,256], index: 13, kind: output, shape index: {}]
  %s14 = sld [smem:[#allocation0]]
  $region122: #{tpu_custom_call.1} parent=0
    _
  %s16 = ssub.s32 1, %s14
  %s17 = scalar_select 0, %s16, %s14
  %s18 = sshll.u32 %s0, 4
  %s19 = int_to_ptr.vmem [resolvable:$true] %s18
  %21 = dma.vmem_to_smem %s19, 16, [#allocation3], [#allocation2]
  %v22 = vstv %s12
  %23 = vst [vmem:[#allocation4] sm:$0x1] %v22
  %24 = dma.done [#allocation2], 16
  %25 = sfence
  $region1: #{tpu_custom_call.1} parent=0
    #allocation5 [shape = 'u8[8192]{0}', space=vmem, size = 0x2000, scoped, tag = 'input window, operand 1']
    #allocation6 [shape = 'u8[1024]{0}', space=vmem, size = 0x400, scoped, tag = 'output window, operand 0']
    #allocation7 [shape = 's32[2]{0}', space=sflag, size = 0x8, scoped, tag = 'scoped memory for tpu_custom_call.1']
    %26 = vsyncpa [#allocation7], 0
    %s27 = scalar_lea.sflag [#allocation7], 1
    %28 = vsyncpa %s27, 0
    loop: start=0, step=1, limit=6
    $region2: #{tpu_custom_call.1} parent=1 // loop_pre_header
      _
    $region3: #{tpu_custom_call.1} parent=1 // loop_header
      %s30 = sphi 0, %s34
      %p31 = scmp.ge.s32.totalorder %s30, 6
      %s37 = sphi 0, %s49
      %s38 = sphi 0, %s45
      %s39 = sphi 0, %s37
      %s40 = sphi 0, %s38
      %s41 = sphi 0, %s39
      %s42 = sphi 0, %s40
      %s54 = sphi 0, %s56
      %s57 = sphi 0, %s54
      %s58 = sphi 0, %s57
      %s74 = sphi 0, %s58
      %s82 = sphi 0, %s84
      %s85 = sphi 0, %s82
      %s86 = sphi 0, %s85
      %s102 = sphi 0, %s86
      %s106 = sphi 0, %s106
      %s108 = sphi 0, %s106
      %s109 = sphi 0, %s108
      %s123 = sphi 0, %s109
      %s127 = sphi 0, %s127
      %s129 = sphi 0, %s127
      %s130 = sphi 0, %s129
      %s144 = sphi 0, %s130
      %s148 = sphi 0, %s148
      %s150 = sphi 0, %s148
      %s151 = sphi 0, %s150
      %s165 = sphi 0, %s151
      %s169 = sphi 0, %s169
      %s171 = sphi 0, %s169
      %s172 = sphi 0, %s171
      %s186 = sphi 0, %s172
      %s190 = sphi 0, %s190
      %s192 = sphi 0, %s190
      %s193 = sphi 0, %s192
      %s207 = sphi 0, %s193
      %s211 = sphi 0, %s211
      %s213 = sphi 0, %s211
      %s214 = sphi 0, %s213
      %s228 = sphi 0, %s214
      %s232 = sphi 0, %s232
      %s234 = sphi 0, %s232
      %s235 = sphi 0, %s234
      %s249 = sphi 0, %s235
      %s253 = sphi 0, %s253
      %s255 = sphi 0, %s253
      %s256 = sphi 0, %s255
      %s270 = sphi 0, %s256
      %s274 = sphi 0, %s274
      %s276 = sphi 0, %s274
      %s277 = sphi 0, %s276
      %s291 = sphi 0, %s277
      %s295 = sphi 0, %s295
      %s297 = sphi 0, %s295
      %s298 = sphi 0, %s297
      %s312 = sphi 0, %s298
      %s320 = sphi 0, %s322
      %s323 = sphi 0, %s320
      %s324 = sphi 0, %s323
      %s340 = sphi 0, %s324
    $region4: #{tpu_custom_call.1} parent=1 // loop_header_branch
      %33 = sbr.rel (%p31) target = $region8
    $region5: #{tpu_custom_call.1} parent=1 // loop_body
      %s35 = ssub.s32 %s30, 1
      %s36 = ssub.s32 %s30, 2
      %s43 = sadd.s32 1, %s38
      %p44 = scmp.ge.s32.totalorder %s43, 2
      %s45 = scalar_select %p44, 0, %s43
      %s46 = sadd.s32 1, %s37
      %s47 = scalar_select %p44, %s46, %s37
      %p48 = scmp.ge.s32.totalorder %s47, 2
      %s49 = scalar_select %p48, 0, %s47
      %s50 = ssub.s32 %s37, %s49
      %s51 = ssub.s32 %s38, %s45
      %s52 = sor.u32 %s50, %s51
      %p53 = scmp.eq.s32.totalorder %s52, 0
      %s55 = sadd.s32 %s54, 1
      %s56 = scalar_select %p53, %s54, %s55
      %p59 = pneg %p53
      %p60 = scmp.eq.s32.totalorder %s30, 3
      %p61 = por %p59, %p60
      %p62 = scmp.ne.s32.totalorder %s54, %s57
      %p63 = scmp.eq.s32.totalorder %s30, 0
      %p64 = por %p62, %p63
      %p65 = scmp.ne.s32.totalorder %s54, %s57
      %p66 = scmp.eq.s32.totalorder %s35, 3
      %p67 = por %p65, %p66
      %p68 = scmp.ne.s32.totalorder %s57, %s58
      %p69 = scmp.eq.s32.totalorder %s35, 0
      %p70 = por %p68, %p69
      %p71 = scmp.ne.s32.totalorder %s57, %s58
      %p72 = scmp.eq.s32.totalorder %s36, 3
      %p73 = por %p71, %p72
      %p75 = scmp.ne.s32.totalorder %s58, %s74
      %p76 = scmp.eq.s32.totalorder %s36, 0
      %p77 = por %p75, %p76
      %s78 = ssub.s32 %s37, %s49
      %s79 = ssub.s32 %s38, %s45
      %s80 = sor.u32 %s78, %s79
      %p81 = scmp.eq.s32.totalorder %s80, 0
      %s83 = sadd.s32 %s82, 1
      %s84 = scalar_select %p81, %s82, %s83
      %p87 = pneg %p81
      %p88 = scmp.eq.s32.totalorder %s30, 3
      %p89 = por %p87, %p88
      %p90 = scmp.ne.s32.totalorder %s82, %s85
      %p91 = scmp.eq.s32.totalorder %s30, 0
      %p92 = por %p90, %p91
      %p93 = scmp.ne.s32.totalorder %s82, %s85
      %p94 = scmp.eq.s32.totalorder %s35, 3
      %p95 = por %p93, %p94
      %p96 = scmp.ne.s32.totalorder %s85, %s86
      %p97 = scmp.eq.s32.totalorder %s35, 0
      %p98 = por %p96, %p97
      %p99 = scmp.ne.s32.totalorder %s85, %s86
      %p100 = scmp.eq.s32.totalorder %s36, 3
      %p101 = por %p99, %p100
      %p103 = scmp.ne.s32.totalorder %s86, %s102
      %p104 = scmp.eq.s32.totalorder %s36, 0
      %p105 = por %p103, %p104
      %s107 = sadd.s32 %s106, 1
      %p110 = scmp.eq.s32.totalorder %s30, 3
      %p111 = scmp.ne.s32.totalorder %s106, %s108
      %p112 = scmp.eq.s32.totalorder %s30, 0
      %p113 = por %p111, %p112
      %p114 = scmp.ne.s32.totalorder %s106, %s108
      %p115 = scmp.eq.s32.totalorder %s35, 3
      %p116 = por %p114, %p115
      %p117 = scmp.ne.s32.totalorder %s108, %s109
      %p118 = scmp.eq.s32.totalorder %s35, 0
      %p119 = por %p117, %p118
      %p120 = scmp.ne.s32.totalorder %s108, %s109
      %p121 = scmp.eq.s32.totalorder %s36, 3
      %p122 = por %p120, %p121
      %p124 = scmp.ne.s32.totalorder %s109, %s123
      %p125 = scmp.eq.s32.totalorder %s36, 0
      %p126 = por %p124, %p125
      %s128 = sadd.s32 %s127, 1
      %p131 = scmp.eq.s32.totalorder %s30, 3
      %p132 = scmp.ne.s32.totalorder %s127, %s129
      %p133 = scmp.eq.s32.totalorder %s30, 0
      %p134 = por %p132, %p133
      %p135 = scmp.ne.s32.totalorder %s127, %s129
      %p136 = scmp.eq.s32.totalorder %s35, 3
      %p137 = por %p135, %p136
      %p138 = scmp.ne.s32.totalorder %s129, %s130
      %p139 = scmp.eq.s32.totalorder %s35, 0
      %p140 = por %p138, %p139
      %p141 = scmp.ne.s32.totalorder %s129, %s130
      %p142 = scmp.eq.s32.totalorder %s36, 3
      %p143 = por %p141, %p142
      %p145 = scmp.ne.s32.totalorder %s130, %s144
      %p146 = scmp.eq.s32.totalorder %s36, 0
      %p147 = por %p145, %p146
      %s149 = sadd.s32 %s148, 1
      %p152 = scmp.eq.s32.totalorder %s30, 3
      %p153 = scmp.ne.s32.totalorder %s148, %s150
      %p154 = scmp.eq.s32.totalorder %s30, 0
      %p155 = por %p153, %p154
      %p156 = scmp.ne.s32.totalorder %s148, %s150
      %p157 = scmp.eq.s32.totalorder %s35, 3
      %p158 = por %p156, %p157
      %p159 = scmp.ne.s32.totalorder %s150, %s151
      %p160 = scmp.eq.s32.totalorder %s35, 0
      %p161 = por %p159, %p160
      %p162 = scmp.ne.s32.totalorder %s150, %s151
      %p163 = scmp.eq.s32.totalorder %s36, 3
      %p164 = por %p162, %p163
      %p166 = scmp.ne.s32.totalorder %s151, %s165
      %p167 = scmp.eq.s32.totalorder %s36, 0
      %p168 = por %p166, %p167
      %s170 = sadd.s32 %s169, 1
      %p173 = scmp.eq.s32.totalorder %s30, 3
      %p174 = scmp.ne.s32.totalorder %s169, %s171
      %p175 = scmp.eq.s32.totalorder %s30, 0
      %p176 = por %p174, %p175
      %p177 = scmp.ne.s32.totalorder %s169, %s171
      %p178 = scmp.eq.s32.totalorder %s35, 3
      %p179 = por %p177, %p178
      %p180 = scmp.ne.s32.totalorder %s171, %s172
      %p181 = scmp.eq.s32.totalorder %s35, 0
      %p182 = por %p180, %p181
      %p183 = scmp.ne.s32.totalorder %s171, %s172
      %p184 = scmp.eq.s32.totalorder %s36, 3
      %p185 = por %p183, %p184
      %p187 = scmp.ne.s32.totalorder %s172, %s186
      %p188 = scmp.eq.s32.totalorder %s36, 0
      %p189 = por %p187, %p188
      %s191 = sadd.s32 %s190, 1
      %p194 = scmp.eq.s32.totalorder %s30, 3
      %p195 = scmp.ne.s32.totalorder %s190, %s192
      %p196 = scmp.eq.s32.totalorder %s30, 0
      %p197 = por %p195, %p196
      %p198 = scmp.ne.s32.totalorder %s190, %s192
      %p199 = scmp.eq.s32.totalorder %s35, 3
      %p200 = por %p198, %p199
      %p201 = scmp.ne.s32.totalorder %s192, %s193
      %p202 = scmp.eq.s32.totalorder %s35, 0
      %p203 = por %p201, %p202
      %p204 = scmp.ne.s32.totalorder %s192, %s193
      %p205 = scmp.eq.s32.totalorder %s36, 3
      %p206 = por %p204, %p205
      %p208 = scmp.ne.s32.totalorder %s193, %s207
      %p209 = scmp.eq.s32.totalorder %s36, 0
      %p210 = por %p208, %p209
      %s212 = sadd.s32 %s211, 1
      %p215 = scmp.eq.s32.totalorder %s30, 3
      %p216 = scmp.ne.s32.totalorder %s211, %s213
      %p217 = scmp.eq.s32.totalorder %s30, 0
      %p218 = por %p216, %p217
      %p219 = scmp.ne.s32.totalorder %s211, %s213
      %p220 = scmp.eq.s32.totalorder %s35, 3
      %p221 = por %p219, %p220
      %p222 = scmp.ne.s32.totalorder %s213, %s214
      %p223 = scmp.eq.s32.totalorder %s35, 0
      %p224 = por %p222, %p223
      %p225 = scmp.ne.s32.totalorder %s213, %s214
      %p226 = scmp.eq.s32.totalorder %s36, 3
      %p227 = por %p225, %p226
      %p229 = scmp.ne.s32.totalorder %s214, %s228
      %p230 = scmp.eq.s32.totalorder %s36, 0
      %p231 = por %p229, %p230
      %s233 = sadd.s32 %s232, 1
      %p236 = scmp.eq.s32.totalorder %s30, 3
      %p237 = scmp.ne.s32.totalorder %s232, %s234
      %p238 = scmp.eq.s32.totalorder %s30, 0
      %p239 = por %p237, %p238
      %p240 = scmp.ne.s32.totalorder %s232, %s234
      %p241 = scmp.eq.s32.totalorder %s35, 3
      %p242 = por %p240, %p241
      %p243 = scmp.ne.s32.totalorder %s234, %s235
      %p244 = scmp.eq.s32.totalorder %s35, 0
      %p245 = por %p243, %p244
      %p246 = scmp.ne.s32.totalorder %s234, %s235
      %p247 = scmp.eq.s32.totalorder %s36, 3
      %p248 = por %p246, %p247
      %p250 = scmp.ne.s32.totalorder %s235, %s249
      %p251 = scmp.eq.s32.totalorder %s36, 0
      %p252 = por %p250, %p251
      %s254 = sadd.s32 %s253, 1
      %p257 = scmp.eq.s32.totalorder %s30, 3
      %p258 = scmp.ne.s32.totalorder %s253, %s255
      %p259 = scmp.eq.s32.totalorder %s30, 0
      %p260 = por %p258, %p259
      %p261 = scmp.ne.s32.totalorder %s253, %s255
      %p262 = scmp.eq.s32.totalorder %s35, 3
      %p263 = por %p261, %p262
      %p264 = scmp.ne.s32.totalorder %s255, %s256
      %p265 = scmp.eq.s32.totalorder %s35, 0
      %p266 = por %p264, %p265
      %p267 = scmp.ne.s32.totalorder %s255, %s256
      %p268 = scmp.eq.s32.totalorder %s36, 3
      %p269 = por %p267, %p268
      %p271 = scmp.ne.s32.totalorder %s256, %s270
      %p272 = scmp.eq.s32.totalorder %s36, 0
      %p273 = por %p271, %p272
      %s275 = sadd.s32 %s274, 1
      %p278 = scmp.eq.s32.totalorder %s30, 3
      %p279 = scmp.ne.s32.totalorder %s274, %s276
      %p280 = scmp.eq.s32.totalorder %s30, 0
      %p281 = por %p279, %p280
      %p282 = scmp.ne.s32.totalorder %s274, %s276
      %p283 = scmp.eq.s32.totalorder %s35, 3
      %p284 = por %p282, %p283
      %p285 = scmp.ne.s32.totalorder %s276, %s277
      %p286 = scmp.eq.s32.totalorder %s35, 0
      %p287 = por %p285, %p286
      %p288 = scmp.ne.s32.totalorder %s276, %s277
      %p289 = scmp.eq.s32.totalorder %s36, 3
      %p290 = por %p288, %p289
      %p292 = scmp.ne.s32.totalorder %s277, %s291
      %p293 = scmp.eq.s32.totalorder %s36, 0
      %p294 = por %p292, %p293
      %s296 = sadd.s32 %s295, 1
      %p299 = scmp.eq.s32.totalorder %s30, 3
      %p300 = scmp.ne.s32.totalorder %s295, %s297
      %p301 = scmp.eq.s32.totalorder %s30, 0
      %p302 = por %p300, %p301
      %p303 = scmp.ne.s32.totalorder %s295, %s297
      %p304 = scmp.eq.s32.totalorder %s35, 3
      %p305 = por %p303, %p304
      %p306 = scmp.ne.s32.totalorder %s297, %s298
      %p307 = scmp.eq.s32.totalorder %s35, 0
      %p308 = por %p306, %p307
      %p309 = scmp.ne.s32.totalorder %s297, %s298
      %p310 = scmp.eq.s32.totalorder %s36, 3
      %p311 = por %p309, %p310
      %p313 = scmp.ne.s32.totalorder %s298, %s312
      %p314 = scmp.eq.s32.totalorder %s36, 0
      %p315 = por %p313, %p314
      %s316 = ssub.s32 %s37, %s49
      %s317 = ssub.s32 %s38, %s45
      %s318 = sor.u32 %s316, %s317
      %p319 = scmp.eq.s32.totalorder %s318, 0
      %s321 = sadd.s32 %s320, 1
      %s322 = scalar_select %p319, %s320, %s321
      %p325 = pneg %p319
      %p326 = scmp.eq.s32.totalorder %s30, 3
      %p327 = por %p325, %p326
      %p328 = scmp.ne.s32.totalorder %s320, %s323
      %p329 = scmp.eq.s32.totalorder %s30, 0
      %p330 = por %p328, %p329
      %p331 = scmp.ne.s32.totalorder %s320, %s323
      %p332 = scmp.eq.s32.totalorder %s35, 3
      %p333 = por %p331, %p332
      %p334 = scmp.ne.s32.totalorder %s323, %s324
      %p335 = scmp.eq.s32.totalorder %s35, 0
      %p336 = por %p334, %p335
      %p337 = scmp.ne.s32.totalorder %s323, %s324
      %p338 = scmp.eq.s32.totalorder %s36, 3
      %p339 = por %p337, %p338
      %p341 = scmp.ne.s32.totalorder %s324, %s340
      %p342 = scmp.eq.s32.totalorder %s36, 0
      %p343 = por %p341, %p342
      %p344 = scmp.le.s32.totalorder 1, %s30
      %p345 = scmp.lt.s32.totalorder %s30, 5
      %p346 = pnand %p344, %p345
      %p347 = pneg %p346
      // Predicated region
      $region9: #{tpu_custom_call.1} parent=5 // pred_check
        _
      $region10: #{tpu_custom_call.1} parent=5 // pred_check_branch
        %349 = sbr.rel (%p346) target = $region12
      $region11: #{tpu_custom_call.1} parent=5 // pred_region
        %s350 = ssub.s32 %s30, 1
        // Predicated region
        $region13: #{tpu_custom_call.1} parent=11 // pred_check
          %p351 = pneg %p119
        $region14: #{tpu_custom_call.1} parent=11 // pred_check_branch
          %353 = sbr.rel (%p351) target = $region16
        $region15: #{tpu_custom_call.1} parent=11 // pred_region
          _
        $region16: #{tpu_custom_call.1} parent=11 // pred_fallthru
          _
        // Predicated region
        $region17: #{tpu_custom_call.1} parent=11 // pred_check
          %p354 = pneg %p140
        $region18: #{tpu_custom_call.1} parent=11 // pred_check_branch
          %356 = sbr.rel (%p354) target = $region20
        $region19: #{tpu_custom_call.1} parent=11 // pred_region
          _
        $region20: #{tpu_custom_call.1} parent=11 // pred_fallthru
          _
        // Predicated region
        $region21: #{tpu_custom_call.1} parent=11 // pred_check
          %p357 = pneg %p161
        $region22: #{tpu_custom_call.1} parent=11 // pred_check_branch
          %359 = sbr.rel (%p357) target = $region24
        $region23: #{tpu_custom_call.1} parent=11 // pred_region
          _
        $region24: #{tpu_custom_call.1} parent=11 // pred_fallthru
          _
        // Predicated region
        $region25: #{tpu_custom_call.1} parent=11 // pred_check
          %p360 = pneg %p182
        $region26: #{tpu_custom_call.1} parent=11 // pred_check_branch
          %362 = sbr.rel (%p360) target = $region28
        $region27: #{tpu_custom_call.1} parent=11 // pred_region
          _
        $region28: #{tpu_custom_call.1} parent=11 // pred_fallthru
          _
        // Predicated region
        $region29: #{tpu_custom_call.1} parent=11 // pred_check
          %p363 = pneg %p203
        $region30: #{tpu_custom_call.1} parent=11 // pred_check_branch
          %365 = sbr.rel (%p363) target = $region32
        $region31: #{tpu_custom_call.1} parent=11 // pred_region
          _
        $region32: #{tpu_custom_call.1} parent=11 // pred_fallthru
          _
        // Predicated region
        $region33: #{tpu_custom_call.1} parent=11 // pred_check
          %p366 = pneg %p224
        $region34: #{tpu_custom_call.1} parent=11 // pred_check_branch
          %368 = sbr.rel (%p366) target = $region36
        $region35: #{tpu_custom_call.1} parent=11 // pred_region
          _
        $region36: #{tpu_custom_call.1} parent=11 // pred_fallthru
          _
        // Predicated region
        $region37: #{tpu_custom_call.1} parent=11 // pred_check
          %p369 = pneg %p245
        $region38: #{tpu_custom_call.1} parent=11 // pred_check_branch
          %371 = sbr.rel (%p369) target = $region40
        $region39: #{tpu_custom_call.1} parent=11 // pred_region
          _
        $region40: #{tpu_custom_call.1} parent=11 // pred_fallthru
          _
        // Predicated region
        $region41: #{tpu_custom_call.1} parent=11 // pred_check
          %p372 = pneg %p266
        $region42: #{tpu_custom_call.1} parent=11 // pred_check_branch
          %374 = sbr.rel (%p372) target = $region44
        $region43: #{tpu_custom_call.1} parent=11 // pred_region
          _
        $region44: #{tpu_custom_call.1} parent=11 // pred_fallthru
          _
        // Predicated region
        $region45: #{tpu_custom_call.1} parent=11 // pred_check
          %p375 = pneg %p287
        $region46: #{tpu_custom_call.1} parent=11 // pred_check_branch
          %377 = sbr.rel (%p375) target = $region48
        $region47: #{tpu_custom_call.1} parent=11 // pred_region
          _
        $region48: #{tpu_custom_call.1} parent=11 // pred_fallthru
          _
        // Predicated region
        $region49: #{tpu_custom_call.1} parent=11 // pred_check
          %p378 = pneg %p308
        $region50: #{tpu_custom_call.1} parent=11 // pred_check_branch
          %380 = sbr.rel (%p378) target = $region52
        $region51: #{tpu_custom_call.1} parent=11 // pred_region
          _
        $region52: #{tpu_custom_call.1} parent=11 // pred_fallthru
          _
      $region12: #{tpu_custom_call.1} parent=5 // pred_fallthru
        _
      %p381 = scmp.lt.s32.totalorder %s30, 4
      // Predicated region
      $region53: #{tpu_custom_call.1} parent=5 // pred_check
        %p382 = pneg %p381
      $region54: #{tpu_custom_call.1} parent=5 // pred_check_branch
        %384 = sbr.rel (%p382) target = $region56
      $region55: #{tpu_custom_call.1} parent=5 // pred_region
        // Predicated region
        $region57: #{tpu_custom_call.1} parent=55 // pred_check
          %p385 = pneg %p64
        $region58: #{tpu_custom_call.1} parent=55 // pred_check_branch
          %387 = sbr.rel (%p385) target = $region60
        $region59: #{tpu_custom_call.1} parent=55 // pred_region
          %s388 = sand.u32 %s54, 1
          %s389 = sand.u32 %s54, 1
          %s390 = smul.addr %s389, 8
          %s391 = scalar_lea.vmem [#allocation5], %s390
          %s392 = smul.addr %s37, 4
          %s393 = sadd.s32 %s38, %s392
          %s394 = smul.addr %s393, 4
          %s395 = scalar_lea.vmem %s1, %s394
          // Predicated region
          $region61: #{tpu_custom_call.1} parent=59 // pred_check
            _
          $region62: #{tpu_custom_call.1} parent=59 // pred_check_branch
            %397 = sbr.rel (0) target = $region64
          $region63: #{tpu_custom_call.1} parent=59 // pred_region
            // Predicated region
            $region65: #{tpu_custom_call.1} parent=63 // pred_check
              _
            $region66: #{tpu_custom_call.1} parent=63 // pred_check_branch
              %399 = sbr.rel target = $region68
            $region67: #{tpu_custom_call.1} parent=63 // pred_region
              // Predicated region
              $region80: #{tpu_custom_call.1} parent=67 // pred_check
                _
              $region81: #{tpu_custom_call.1} parent=67 // pred_check_branch
                %416 = sbr.rel (0) target = $region83
              $region82: #{tpu_custom_call.1} parent=67 // pred_region
                loop: start=0, step=1, limit=1
                $region84: #{tpu_custom_call.1} parent=82 // loop_pre_header
                  _
                $region85: #{tpu_custom_call.1} parent=82 // loop_header
                  %s418 = sphi 0, %s422
                  %p419 = scmp.ge.s32.totalorder %s418, 1
                  %s423 = sphi %s395, %s395
                  %s424 = sphi %s391, %s391
                $region86: #{tpu_custom_call.1} parent=82 // loop_header_branch
                  %421 = sbr.rel (%p419) target = $region90
                $region87: #{tpu_custom_call.1} parent=82 // loop_body
                  _
                $region88: #{tpu_custom_call.1} parent=82 // loop_footer
                  %s422 = sadd.s32 1, %s418
                $region89: #{tpu_custom_call.1} parent=82 // loop_footer_branch
                  %417 = sbr.rel target = $region85
                $region90: #{tpu_custom_call.1} parent=82 // loop_exit
                  _
                loop: start=0, step=1, limit=1
                $region91: #{tpu_custom_call.1} parent=82 // loop_pre_header
                  _
                $region92: #{tpu_custom_call.1} parent=82 // loop_header
                  %s427 = sphi 0, %s431
                  %p428 = scmp.ge.s32.totalorder %s427, 1
                  %s432 = sphi %s395, %s395
                  %s433 = sphi %s391, %s391
                $region93: #{tpu_custom_call.1} parent=82 // loop_header_branch
                  %430 = sbr.rel (%p428) target = $region97
                $region94: #{tpu_custom_call.1} parent=82 // loop_body
                  %v434 = vld [vmem:[%s432] sm:$0xf]
                  %435 = vst [vmem:[%s433] sm:$0xf] %v434
                  %v436 = vld [vmem:[%s432 + $0x8] sm:$0xf]
                  %437 = vst [vmem:[%s433 + $0x4] sm:$0xf] %v436
                $region95: #{tpu_custom_call.1} parent=82 // loop_footer
                  %s431 = sadd.s32 1, %s427
                $region96: #{tpu_custom_call.1} parent=82 // loop_footer_branch
                  %426 = sbr.rel target = $region92
                $region97: #{tpu_custom_call.1} parent=82 // loop_exit
                  _
              $region83: #{tpu_custom_call.1} parent=67 // pred_fallthru
                _
            $region68: #{tpu_custom_call.1} parent=63 // pred_fallthru
              _
            // Predicated region
            $region69: #{tpu_custom_call.1} parent=63 // pred_check
              _
            $region70: #{tpu_custom_call.1} parent=63 // pred_check_branch
              %401 = sbr.rel (0) target = $region72
            $region71: #{tpu_custom_call.1} parent=63 // pred_region
              loop: start=0, step=1, limit=1
              $region73: #{tpu_custom_call.1} parent=71 // loop_pre_header
                _
              $region74: #{tpu_custom_call.1} parent=71 // loop_header
                %s404 = sphi 0, %s408
                %p405 = scmp.ge.s32.totalorder %s404, 1
                %s409 = sphi %s395, %s395
                %s410 = sphi %s391, %s391
              $region75: #{tpu_custom_call.1} parent=71 // loop_header_branch
                %407 = sbr.rel (%p405) target = $region79
              $region76: #{tpu_custom_call.1} parent=71 // loop_body
                %v411 = vld [vmem:[%s409] sm:$0xf]
                %412 = vst [vmem:[%s410] sm:$0xf] %v411
                %v413 = vld [vmem:[%s409 + $0x8] sm:$0xf]
                %414 = vst [vmem:[%s410 + $0x4] sm:$0xf] %v413
              $region77: #{tpu_custom_call.1} parent=71 // loop_footer
                %s408 = sadd.s32 1, %s404
              $region78: #{tpu_custom_call.1} parent=71 // loop_footer_branch
                %403 = sbr.rel target = $region74
              $region79: #{tpu_custom_call.1} parent=71 // loop_exit
                _
            $region72: #{tpu_custom_call.1} parent=63 // pred_fallthru
              _
          $region64: #{tpu_custom_call.1} parent=59 // pred_fallthru
            _
          %438 = vnop
        $region60: #{tpu_custom_call.1} parent=55 // pred_fallthru
          _
        // Predicated region
        $region98: #{tpu_custom_call.1} parent=55 // pred_check
          %p439 = pneg %p92
        $region99: #{tpu_custom_call.1} parent=55 // pred_check_branch
          %441 = sbr.rel (%p439) target = $region101
        $region100: #{tpu_custom_call.1} parent=55 // pred_region
          %p442 = scmp.lt.s32.totalorder %s37, 1
          %s443 = scalar_select %p442, %s37, 1
          %p444 = scmp.lt.s32.totalorder %s38, 1
          %s445 = scalar_select %p444, %s38, 1
          %s446 = smul.addr %s445, 2
          %s447 = smul.addr %s443, 4
          %s448 = sadd.s32 %s446, %s447
          %s449 = smul.addr %s448, 4
          %s450 = scalar_lea.vmem %s2, %s449
        $region101: #{tpu_custom_call.1} parent=55 // pred_fallthru
          _
      $region56: #{tpu_custom_call.1} parent=5 // pred_fallthru
        _
      %p451 = scmp.le.s32.totalorder 1, %s30
      %p452 = scmp.lt.s32.totalorder %s30, 5
      %p453 = pnand %p451, %p452
      %p454 = pneg %p453
      // Predicated region
      $region102: #{tpu_custom_call.1} parent=5 // pred_check
        _
      $region103: #{tpu_custom_call.1} parent=5 // pred_check_branch
        %456 = sbr.rel (%p453) target = $region105
      $region104: #{tpu_custom_call.1} parent=5 // pred_region
        %s457 = ssub.s32 %s30, 1
        %s458 = sand.u32 %s57, 1
        %s459 = sand.u32 %s57, 1
        %s460 = smul.addr %s459, 8
        %s461 = scalar_lea.vmem [#allocation5], %s460
        // Predicated region
        $region106: #{tpu_custom_call.1} parent=104 // pred_check
          %p462 = pneg %p70
        $region107: #{tpu_custom_call.1} parent=104 // pred_check_branch
          %464 = sbr.rel (%p462) target = $region109
        $region108: #{tpu_custom_call.1} parent=104 // pred_region
          _
        $region109: #{tpu_custom_call.1} parent=104 // pred_fallthru
          _
        %s465 = sand.u32 %s57, 1
        %s466 = sand.u32 %s57, 1
        %s467 = smul.addr %s466, 8
        %s468 = scalar_lea.vmem [#allocation5], %s467
        %p469 = pneg %p70
        %p470 = pneg %p67
        %p471 = scmp.lt.s32.totalorder %s39, 1
        %s472 = scalar_select %p471, %s39, 1
        %p473 = scmp.lt.s32.totalorder %s40, 1
        %s474 = scalar_select %p473, %s40, 1
        %s475 = smul.addr %s474, 2
        %s476 = smul.addr %s472, 4
        %s477 = sadd.s32 %s475, %s476
        %s478 = smul.addr %s477, 4
        %s479 = scalar_lea.vmem %s2, %s478
        %p480 = pneg %p98
        %p481 = pneg %p95
        %p482 = pneg %p119
        %p483 = pneg %p116
        %p484 = pneg %p140
        %p485 = pneg %p137
        %p486 = pneg %p161
        %p487 = pneg %p158
        %p488 = pneg %p182
        %p489 = pneg %p179
        %p490 = pneg %p203
        %p491 = pneg %p200
        %p492 = pneg %p224
        %p493 = pneg %p221
        %p494 = pneg %p245
        %p495 = pneg %p242
        %p496 = pneg %p266
        %p497 = pneg %p263
        %p498 = pneg %p287
        %p499 = pneg %p284
        %p500 = pneg %p308
        %p501 = pneg %p305
        %p502 = pneg %p336
        %p503 = pneg %p333
        %s504 = sand.u32 %s323, 1
        %s505 = scalar_lea.sflag [#allocation7], %s504
        %s506 = sand.u32 %s323, 1
        %s507 = scalar_lea.vmem [#allocation6], %s506
        %p508 = scmp.lt.s32.totalorder %s39, 1
        %s509 = scalar_select %p508, %s39, 1
        %p510 = scmp.lt.s32.totalorder %s40, 1
        %s511 = scalar_select %p510, %s40, 1
        %s512 = smul.addr %s511, 2
        %s513 = smul.addr %s509, 4
        %s514 = sadd.s32 %s512, %s513
        %s515 = smul.addr %s514, 4
        %s516 = scalar_lea.vmem %s2, %s515
        %s520 = smul.u32 %s40, 128
        %s521 = sld [smem:[#allocation3 + %s39]]
        %v522 = vld [vmem:[%s461] sm:$0xf]
        %v523 = vld [vmem:[%s461 + $0x4] sm:$0xf]
        %v524 = vld [vmem:[%s516] sm:$0xf]
        %v525 = vld [vmem:[%s516 + $0x4] sm:$0xf]
        %v528 = vunpack.c.l.b16 %v524
        %v529 = vunpack.c.l.b16 %v525
        %v530 = vpack.c.b16 %v529, %v528
        %v533 = vunpack.c.l.b16 %v522
        %v534 = vunpack.c.l.b16 %v523
        %v535 = vpack.c.b16 %v534, %v533
        %536 = vrot.lane.b32.xlu0 %v535, 2
        %v537 = vpop.permute.xlu0 %536
        %vm538 = vcmask 15360
        %v541 = vsel %vm538, %v530, %v537
        %v543 = vsel %vm538, %v537, %v530
        %v545 = vlaneseq
        %v546 = vand.u32 %v545, 127
        %v547 = vadd.s32 %v546, 128
        %s548 = ssub.s32 %s520, 2
        %v549 = vstv %s548
        %v550 = vadd.s32 %v546, %v549
        %v551 = vadd.s32 %v547, %v549
        %v552 = vstv %s521
        %vm553 = vcmp.lt.s32.totalorder %v550, %v552
        %vm554 = vcmp.lt.s32.totalorder %v551, %v552
        %v555 = vsel %vm553, 1, 0
        %v556 = vsel %vm554, 1, 0
        %vm557 = vcmp.eq.s32.totalorder %v555, 1
        %vm558 = vcmp.eq.s32.totalorder %v556, 1
        %vm559 = vmpackc.low %vm558, %vm557
        %v560 = vsel %vm559, 65537, 0
        %v561 = vlaneseq
        %v562 = vshrl.u32 %v561, 7
        %v563 = vsub.s32 0, %v562
        %v564 = vrot.slane %v560, %v563
        %v565 = vlaneseq
        %v566 = vshrl.u32 %v565, 7
        %v567 = vsub.s32 4, %v566
        %v568 = vrot.slane %v560, %v567
        %vm569 = vcmp.ne.s16.totalorder %v564, 0
        %vm570 = vcmp.ne.s16.totalorder %v568, 0
        %v571 = vsel %vm569, %v541, 0
        %v572 = vsel %vm570, %v543, 0
        %575 = vrot.lane.b32.xlu0 %v571, 127
        %v576 = vpop.permute.xlu0 %575
        %577 = vrot.lane.b32.xlu0 %v572, 127
        %v578 = vpop.permute.xlu0 %577
        %vm579 = vcmask 1039360
        %v580 = vsel %vm579, %v576, %v578
        %583 = vrot.lane.b32.xlu0 %v571, 126
        %v584 = vpop.permute.xlu0 %583
        %585 = vrot.lane.b32.xlu0 %v572, 126
        %v586 = vpop.permute.xlu0 %585
        %vm587 = vcmask 1031168
        %v588 = vsel %vm587, %v584, %v586
        %v591 = vld [vmem:[%s3] sm:$0xf]
        %v592 = vld [vmem:[%s3 + $0x4] sm:$0xf]
        %v593 = vld [vmem:[%s3 + $0x8] sm:$0xf]
        %v594 = vld [vmem:[%s3 + $0xc] sm:$0xf]
        %v595 = vld [vmem:[%s4] sm:$0xff]
        %v596 = vld [vmem:[%s4 + $0x8] sm:$0xff]
        %v597 = vld [vmem:[%s4 + $0x10] sm:$0xff]
        %v598 = vld [vmem:[%s4 + $0x18] sm:$0xff]
        %600 = vset.pattern.permute.xlu0 0
        %601 = vperm.xlu0 %600, %v595
        %v602 = vpop.permute.xlu0 %601
        %605 = vset.pattern.permute.xlu0 0
        %606 = vperm.xlu0 %605, %v596
        %v607 = vpop.permute.xlu0 %606
        %610 = vset.pattern.permute.xlu0 0
        %611 = vperm.xlu0 %610, %v597
        %v612 = vpop.permute.xlu0 %611
        %615 = vset.pattern.permute.xlu0 0
        %616 = vperm.xlu0 %615, %v598
        %v617 = vpop.permute.xlu0 %616
        %v623 = vunpack.c.l.b16 %v591
        %v624 = vunpack.c.l.b16 %v592
        %v625 = vunpack.c.l.b16 %v593
        %v626 = vunpack.c.l.b16 %v594
        %v627 = vpack.c.b16 %v624, %v623
        %v628 = vpack.c.b16 %v626, %v625
        %vm629 = vcmask 392192
        %v631 = vsel %vm629, %v627, 0
        %v634 = vsel %vm629, %v628, 0
        %636 = vmatprep.subr.bf16.mxu0 %v572
        %637 = vmatpush1.bf16.msra.mxu0 %v571
        %638 = vmatprep.subr.bf16.mxu0 %v578
        %639 = vmatpush1.bf16.msra.mxu0 %v580
        %640 = vmatprep.subr.bf16.mxu0 %v586
        %641 = vmatpush1.bf16.msra.mxu0 %v588
        %642 = vmatprep.subr.bf16.mxu0 0
        %643 = vmatpush1.bf16.msra.mxu0 0
        %644 = vmatprep.subr.bf16.mxu0 0
        %645 = vmatpush1.bf16.msra.mxu0 0
        %646 = vmatprep.subr.bf16.mxu0 0
        %647 = vmatpush1.bf16.msra.mxu0 0
        %648 = vmatprep.subr.bf16.mxu0 0
        %649 = vmatpush1.bf16.msra.mxu0 0
        %650 = vmatprep.subr.bf16.mxu0 0
        %651 = vmatpush1.bf16.msra.mxu0 0
        %652 = vmatprep.subr.bf16.mxu0 0
        %653 = vmatpush1.bf16.msra.mxu0 0
        %654 = vmatprep.subr.bf16.mxu0 0
        %655 = vmatpush1.bf16.msra.mxu0 0
        %656 = vmatprep.subr.bf16.mxu0 0
        %657 = vmatpush1.bf16.msra.mxu0 0
        %658 = vmatprep.subr.bf16.mxu0 0
        %659 = vmatpush1.bf16.msra.mxu0 0
        %660 = vmatprep.subr.bf16.mxu0 0
        %661 = vmatpush1.bf16.msra.mxu0 0
        %662 = vmatprep.subr.bf16.mxu0 0
        %663 = vmatpush1.bf16.msra.mxu0 0
        %664 = vmatprep.subr.bf16.mxu0 0
        %665 = vmatpush1.bf16.msra.mxu0 0
        %666 = vmatprep.subr.bf16.mxu0 0
        %667 = vmatpush1.bf16.msra.mxu0 0
        %668 = vmatprep.mubr.bf16.mxu0 0
        %669 = vmatmul.mubr.bf16.gmra.mrb[0].mxu0 %v631
        %v670 = vpop.f32.mrb[0].mxu0
        %v671 = vadd.f32 %v602, %v670
        %v672 = vpop.f32.mrb[0].mxu0
        %v673 = vadd.f32 %v602, %v672
        %v674 = vpop.f32.mrb[0].mxu0
        %v675 = vadd.f32 %v607, %v674
        %v676 = vpop.f32.mrb[0].mxu0
        %v677 = vadd.f32 %v607, %v676
        %678 = vmatprep.mubr.bf16.mxu0 0
        %679 = vmatmul.mubr.bf16.gmra.mrb[0].mxu0 %v634
        %v680 = vpop.f32.mrb[0].mxu0
        %v681 = vadd.f32 %v612, %v680
        %v682 = vpop.f32.mrb[0].mxu0
        %v683 = vadd.f32 %v612, %v682
        %v684 = vpop.f32.mrb[0].mxu0
        %v685 = vadd.f32 %v617, %v684
        %v686 = vpop.f32.mrb[0].mxu0
        %v687 = vadd.f32 %v617, %v686
        %688 = vdwg.mxu0
        %v689 = vmax.f32 %v671, 0.0
        %v690 = vmax.f32 %v673, 0.0
        %v691 = vmax.f32 %v675, 0.0
        %v692 = vmax.f32 %v677, 0.0
        %v693 = vmax.f32 %v681, 0.0
        %v694 = vmax.f32 %v683, 0.0
        %v695 = vmax.f32 %v685, 0.0
        %v696 = vmax.f32 %v687, 0.0
        %v697 = vadd.f32 %v689, %v691
        %v698 = vadd.f32 %v697, %v693
        %v699 = vadd.f32 %v698, %v695
        %v700 = vrot.slane %v699, 4
        %v701 = vadd.f32 %v699, %v700
        %v702 = vrot.slane %v701, 2
        %v703 = vadd.f32 %v701, %v702
        %v704 = vrot.slane %v703, 1
        %v705 = vadd.f32 %v703, %v704
        %v706 = vsel %vm538, %v690, 0.0
        %v707 = vsel %vm538, %v692, 0.0
        %v708 = vadd.f32 %v706, %v707
        %v709 = vsel %vm538, %v694, 0.0
        %v710 = vadd.f32 %v708, %v709
        %v711 = vsel %vm538, %v696, 0.0
        %v712 = vadd.f32 %v710, %v711
        %v713 = vrot.slane %v712, 4
        %v714 = vadd.f32 %v712, %v713
        %v715 = vrot.slane %v714, 2
        %v716 = vadd.f32 %v714, %v715
        %v717 = vrot.slane %v716, 1
        %v718 = vadd.f32 %v716, %v717
        %v719 = vmul.f32 %v705, 0.03125
        %v720 = vmul.f32 %v718, 0.03125
        %v721 = vmul.f32 %v689, %v689
        %v722 = vmul.f32 %v690, %v690
        %v723 = vmul.f32 %v691, %v691
        %v724 = vmul.f32 %v692, %v692
        %v725 = vmul.f32 %v693, %v693
        %v726 = vmul.f32 %v694, %v694
        %v727 = vmul.f32 %v695, %v695
        %v728 = vmul.f32 %v696, %v696
        %v729 = vadd.f32 %v721, %v723
        %v730 = vadd.f32 %v729, %v725
        %v731 = vadd.f32 %v730, %v727
        %v732 = vrot.slane %v731, 4
        %v733 = vadd.f32 %v731, %v732
        %v734 = vrot.slane %v733, 2
        %v735 = vadd.f32 %v733, %v734
        %v736 = vrot.slane %v735, 1
        %v737 = vadd.f32 %v735, %v736
        %v738 = vsel %vm538, %v722, 0.0
        %v739 = vsel %vm538, %v724, 0.0
        %v740 = vadd.f32 %v738, %v739
        %v741 = vsel %vm538, %v726, 0.0
        %v742 = vadd.f32 %v740, %v741
        %v743 = vsel %vm538, %v728, 0.0
        %v744 = vadd.f32 %v742, %v743
        %v745 = vrot.slane %v744, 4
        %v746 = vadd.f32 %v744, %v745
        %v747 = vrot.slane %v746, 2
        %v748 = vadd.f32 %v746, %v747
        %v749 = vrot.slane %v748, 1
        %v750 = vadd.f32 %v748, %v749
        %v751 = vmul.f32 %v737, 0.03125
        %v752 = vmul.f32 %v750, 0.03125
        %v753 = vmul.f32 %v719, %v719
        %v754 = vmul.f32 %v720, %v720
        %v755 = vsub.f32 %v751, %v753
        %v756 = vsub.f32 %v752, %v754
        %v757 = vmax.f32 %v755, 0.0
        %v758 = vmax.f32 %v756, 0.0
        %v759 = vsub.f32 %v689, %v719
        %v760 = vsub.f32 %v690, %v720
        %v761 = vsub.f32 %v691, %v719
        %v762 = vsub.f32 %v692, %v720
        %v763 = vsub.f32 %v693, %v719
        %v764 = vsub.f32 %v694, %v720
        %v765 = vsub.f32 %v695, %v719
        %v766 = vsub.f32 %v696, %v720
        %v767 = vadd.f32 %v757, 0.0001
        %v768 = vadd.f32 %v758, 0.0001
        %v769 = vrsqrt.pop %v767
        %v770 = vrsqrt.pop %v768
        %v771 = vmul.f32 %v759, %v769
        %v772 = vmul.f32 %v760, %v770
        %v773 = vmul.f32 %v761, %v769
        %v774 = vmul.f32 %v762, %v770
        %v775 = vmul.f32 %v763, %v769
        %v776 = vmul.f32 %v764, %v770
        %v777 = vmul.f32 %v765, %v769
        %v778 = vmul.f32 %v766, %v770
        %v779 = vld [vmem:[%s5] sm:$0xff]
        %v780 = vld [vmem:[%s5 + $0x8] sm:$0xff]
        %v781 = vld [vmem:[%s5 + $0x10] sm:$0xff]
        %v782 = vld [vmem:[%s5 + $0x18] sm:$0xff]
        %784 = vset.pattern.permute.xlu0 0
        %785 = vperm.xlu0 %784, %v779
        %v786 = vpop.permute.xlu0 %785
        %789 = vset.pattern.permute.xlu0 0
        %790 = vperm.xlu0 %789, %v780
        %v791 = vpop.permute.xlu0 %790
        %794 = vset.pattern.permute.xlu0 0
        %795 = vperm.xlu0 %794, %v781
        %v796 = vpop.permute.xlu0 %795
        %799 = vset.pattern.permute.xlu0 0
        %800 = vperm.xlu0 %799, %v782
        %v801 = vpop.permute.xlu0 %800
        %v803 = vmul.f32 %v771, %v786
        %v804 = vmul.f32 %v772, %v786
        %v805 = vmul.f32 %v773, %v791
        %v806 = vmul.f32 %v774, %v791
        %v807 = vmul.f32 %v775, %v796
        %v808 = vmul.f32 %v776, %v796
        %v809 = vmul.f32 %v777, %v801
        %v810 = vmul.f32 %v778, %v801
        %v811 = vld [vmem:[%s6] sm:$0xff]
        %v812 = vld [vmem:[%s6 + $0x8] sm:$0xff]
        %v813 = vld [vmem:[%s6 + $0x10] sm:$0xff]
        %v814 = vld [vmem:[%s6 + $0x18] sm:$0xff]
        %816 = vset.pattern.permute.xlu0 0
        %817 = vperm.xlu0 %816, %v811
        %v818 = vpop.permute.xlu0 %817
        %821 = vset.pattern.permute.xlu0 0
        %822 = vperm.xlu0 %821, %v812
        %v823 = vpop.permute.xlu0 %822
        %826 = vset.pattern.permute.xlu0 0
        %827 = vperm.xlu0 %826, %v813
        %v828 = vpop.permute.xlu0 %827
        %831 = vset.pattern.permute.xlu0 0
        %832 = vperm.xlu0 %831, %v814
        %v833 = vpop.permute.xlu0 %832
        %v835 = vadd.f32 %v803, %v818
        %v836 = vadd.f32 %v804, %v818
        %v837 = vadd.f32 %v805, %v823
        %v838 = vadd.f32 %v806, %v823
        %v839 = vadd.f32 %v807, %v828
        %v840 = vadd.f32 %v808, %v828
        %v841 = vadd.f32 %v809, %v833
        %v842 = vadd.f32 %v810, %v833
        %s843 = ssub.s32 %s520, 1
        %v844 = vstv %s843
        %v845 = vadd.s32 %v546, %v844
        %v846 = vadd.s32 %v547, %v844
        %vm847 = vcmp.ge.s32.totalorder %v845, 0
        %vm848 = vcmp.ge.s32.totalorder %v846, 0
        %vm849 = vcmp.lt.s32.totalorder %v845, %v552
        %vm850 = vcmp.lt.s32.totalorder %v846, %v552
        %vm851 = vmand %vm847, %vm849
        %vm852 = vmand %vm848, %vm850
        %v853 = vsel %vm851, 1, 0
        %v854 = vsel %vm852, 1, 0
        %vm855 = vcmp.eq.s32.totalorder %v853, 1
        %vm856 = vcmp.eq.s32.totalorder %v854, 1
        %v857 = vsel %vm855, %v835, 0.0
        %v858 = vsel %vm856, %v836, 0.0
        %v859 = vsel %vm855, %v837, 0.0
        %v860 = vsel %vm856, %v838, 0.0
        %v861 = vsel %vm855, %v839, 0.0
        %v862 = vsel %vm856, %v840, 0.0
        %v863 = vsel %vm855, %v841, 0.0
        %v864 = vsel %vm856, %v842, 0.0
        %v865 = vpack.c.bf16 %v859, %v857
        %v866 = vpack.c.bf16 %v860, %v858
        %v867 = vpack.c.bf16 %v863, %v861
        %v868 = vpack.c.bf16 %v864, %v862
        %873 = vrot.lane.b32.xlu0 %v865, 127
        %v874 = vpop.permute.xlu0 %873
        %875 = vrot.lane.b32.xlu0 %v866, 127
        %v876 = vpop.permute.xlu0 %875
        %877 = vrot.lane.b32.xlu0 %v867, 127
        %v878 = vpop.permute.xlu0 %877
        %879 = vrot.lane.b32.xlu0 %v868, 127
        %v880 = vpop.permute.xlu0 %879
        %v881 = vsel %vm579, %v874, %v876
        %v882 = vsel %vm579, %v878, %v880
        %885 = vrot.lane.b32.xlu0 %v865, 126
        %v886 = vpop.permute.xlu0 %885
        %887 = vrot.lane.b32.xlu0 %v866, 126
        %v888 = vpop.permute.xlu0 %887
        %889 = vrot.lane.b32.xlu0 %v867, 126
        %v890 = vpop.permute.xlu0 %889
        %891 = vrot.lane.b32.xlu0 %v868, 126
        %v892 = vpop.permute.xlu0 %891
        %v893 = vsel %vm587, %v886, %v888
        %v894 = vsel %vm587, %v890, %v892
        %v897 = vld [vmem:[%s7] sm:$0xf]
        %v898 = vld [vmem:[%s7 + $0x4] sm:$0xf]
        %v899 = vld [vmem:[%s7 + $0x8] sm:$0xf]
        %v900 = vld [vmem:[%s7 + $0xc] sm:$0xf]
        %v901 = vld [vmem:[%s8] sm:$0xff]
        %v902 = vld [vmem:[%s8 + $0x8] sm:$0xff]
        %v903 = vld [vmem:[%s8 + $0x10] sm:$0xff]
        %v904 = vld [vmem:[%s8 + $0x18] sm:$0xff]
        %906 = vset.pattern.permute.xlu0 0
        %907 = vperm.xlu0 %906, %v901
        %v908 = vpop.permute.xlu0 %907
        %911 = vset.pattern.permute.xlu0 0
        %912 = vperm.xlu0 %911, %v902
        %v913 = vpop.permute.xlu0 %912
        %916 = vset.pattern.permute.xlu0 0
        %917 = vperm.xlu0 %916, %v903
        %v918 = vpop.permute.xlu0 %917
        %921 = vset.pattern.permute.xlu0 0
        %922 = vperm.xlu0 %921, %v904
        %v923 = vpop.permute.xlu0 %922
        %v929 = vunpack.c.l.b16 %v897
        %v930 = vunpack.c.l.b16 %v898
        %v931 = vunpack.c.l.b16 %v899
        %v932 = vunpack.c.l.b16 %v900
        %v933 = vpack.c.b16 %v930, %v929
        %v934 = vpack.c.b16 %v932, %v931
        %vm935 = vcmask 785408
        %v937 = vsel %vm935, %v933, 0
        %v940 = vsel %vm935, %v934, 0
        %942 = vmatprep.subr.bf16.mxu0 0
        %943 = vmatpush1.bf16.msra.mxu0 %v865
        %944 = vmatprep.subr.bf16.mxu0 0
        %945 = vmatpush1.bf16.msra.mxu0 %v867
        %946 = vmatprep.subr.bf16.mxu0 0
        %947 = vmatpush1.bf16.msra.mxu0 %v881
        %948 = vmatprep.subr.bf16.mxu0 0
        %949 = vmatpush1.bf16.msra.mxu0 %v882
        %950 = vmatprep.subr.bf16.mxu0 0
        %951 = vmatpush1.bf16.msra.mxu0 %v893
        %952 = vmatprep.subr.bf16.mxu0 0
        %953 = vmatpush1.bf16.msra.mxu0 %v894
        %954 = vmatprep.subr.bf16.mxu0 0
        %955 = vmatpush1.bf16.msra.mxu0 0
        %956 = vmatprep.subr.bf16.mxu0 0
        %957 = vmatpush1.bf16.msra.mxu0 0
        %958 = vmatprep.subr.bf16.mxu0 0
        %959 = vmatpush1.bf16.msra.mxu0 0
        %960 = vmatprep.subr.bf16.mxu0 0
        %961 = vmatpush1.bf16.msra.mxu0 0
        %962 = vmatprep.subr.bf16.mxu0 0
        %963 = vmatpush1.bf16.msra.mxu0 0
        %964 = vmatprep.subr.bf16.mxu0 0
        %965 = vmatpush1.bf16.msra.mxu0 0
        %966 = vmatprep.subr.bf16.mxu0 0
        %967 = vmatpush1.bf16.msra.mxu0 0
        %968 = vmatprep.subr.bf16.mxu0 0
        %969 = vmatpush1.bf16.msra.mxu0 0
        %970 = vmatprep.subr.bf16.mxu0 0
        %971 = vmatpush1.bf16.msra.mxu0 0
        %972 = vmatprep.subr.bf16.mxu0 0
        %973 = vmatpush1.bf16.msra.mxu0 0
        %974 = vmatprep.mubr.bf16.mxu0 0
        %975 = vmatmul.mubr.bf16.gmra.mrb[0].mxu0 %v937
        %v976 = vpop.f32.mrb[0].mxu0
        %v977 = vadd.f32 %v908, %v976
        %v978 = vpop.f32.mrb[0].mxu0
        %v979 = vpop.f32.mrb[0].mxu0
        %v980 = vadd.f32 %v913, %v979
        %v981 = vpop.f32.mrb[0].mxu0
        %982 = vmatprep.mubr.bf16.mxu0 0
        %983 = vmatmul.mubr.bf16.gmra.mrb[0].mxu0 %v940
        %v984 = vpop.f32.mrb[0].mxu0
        %v985 = vadd.f32 %v918, %v984
        %v986 = vpop.f32.mrb[0].mxu0
        %v987 = vpop.f32.mrb[0].mxu0
        %v988 = vadd.f32 %v923, %v987
        %v989 = vpop.f32.mrb[0].mxu0
        %990 = vdwg.mxu0
        %v991 = vmax.f32 %v977, 0.0
        %v992 = vmax.f32 %v980, 0.0
        %v993 = vmax.f32 %v985, 0.0
        %v994 = vmax.f32 %v988, 0.0
        %v995 = vadd.f32 %v991, %v992
        %v996 = vadd.f32 %v995, %v993
        %v997 = vadd.f32 %v996, %v994
        %v998 = vrot.slane %v997, 4
        %v999 = vadd.f32 %v997, %v998
        %v1000 = vrot.slane %v999, 2
        %v1001 = vadd.f32 %v999, %v1000
        %v1002 = vrot.slane %v1001, 1
        %v1003 = vadd.f32 %v1001, %v1002
        %v1004 = vmul.f32 %v1003, 0.03125
        %v1005 = vmul.f32 %v991, %v991
        %v1006 = vmul.f32 %v992, %v992
        %v1007 = vmul.f32 %v993, %v993
        %v1008 = vmul.f32 %v994, %v994
        %v1009 = vadd.f32 %v1005, %v1006
        %v1010 = vadd.f32 %v1009, %v1007
        %v1011 = vadd.f32 %v1010, %v1008
        %v1012 = vrot.slane %v1011, 4
        %v1013 = vadd.f32 %v1011, %v1012
        %v1014 = vrot.slane %v1013, 2
        %v1015 = vadd.f32 %v1013, %v1014
        %v1016 = vrot.slane %v1015, 1
        %v1017 = vadd.f32 %v1015, %v1016
        %v1018 = vmul.f32 %v1017, 0.03125
        %v1019 = vmul.f32 %v1004, %v1004
        %v1020 = vsub.f32 %v1018, %v1019
        %v1021 = vmax.f32 %v1020, 0.0
        %v1022 = vsub.f32 %v991, %v1004
        %v1023 = vsub.f32 %v992, %v1004
        %v1024 = vsub.f32 %v993, %v1004
        %v1025 = vsub.f32 %v994, %v1004
        %v1026 = vadd.f32 %v1021, 0.0001
        %v1027 = vrsqrt.pop %v1026
        %v1028 = vmul.f32 %v1022, %v1027
        %v1029 = vmul.f32 %v1023, %v1027
        %v1030 = vmul.f32 %v1024, %v1027
        %v1031 = vmul.f32 %v1025, %v1027
        %v1032 = vld [vmem:[%s9] sm:$0xff]
        %v1033 = vld [vmem:[%s9 + $0x8] sm:$0xff]
        %v1034 = vld [vmem:[%s9 + $0x10] sm:$0xff]
        %v1035 = vld [vmem:[%s9 + $0x18] sm:$0xff]
        %1037 = vset.pattern.permute.xlu0 0
        %1038 = vperm.xlu0 %1037, %v1032
        %v1039 = vpop.permute.xlu0 %1038
        %1042 = vset.pattern.permute.xlu0 0
        %1043 = vperm.xlu0 %1042, %v1033
        %v1044 = vpop.permute.xlu0 %1043
        %1047 = vset.pattern.permute.xlu0 0
        %1048 = vperm.xlu0 %1047, %v1034
        %v1049 = vpop.permute.xlu0 %1048
        %1052 = vset.pattern.permute.xlu0 0
        %1053 = vperm.xlu0 %1052, %v1035
        %v1054 = vpop.permute.xlu0 %1053
        %v1056 = vmul.f32 %v1028, %v1039
        %v1057 = vmul.f32 %v1029, %v1044
        %v1058 = vmul.f32 %v1030, %v1049
        %v1059 = vmul.f32 %v1031, %v1054
        %v1060 = vld [vmem:[%s10] sm:$0xff]
        %v1061 = vld [vmem:[%s10 + $0x8] sm:$0xff]
        %v1062 = vld [vmem:[%s10 + $0x10] sm:$0xff]
        %v1063 = vld [vmem:[%s10 + $0x18] sm:$0xff]
        %1065 = vset.pattern.permute.xlu0 0
        %1066 = vperm.xlu0 %1065, %v1060
        %v1067 = vpop.permute.xlu0 %1066
        %1070 = vset.pattern.permute.xlu0 0
        %1071 = vperm.xlu0 %1070, %v1061
        %v1072 = vpop.permute.xlu0 %1071
        %1075 = vset.pattern.permute.xlu0 0
        %1076 = vperm.xlu0 %1075, %v1062
        %v1077 = vpop.permute.xlu0 %1076
        %1080 = vset.pattern.permute.xlu0 0
        %1081 = vperm.xlu0 %1080, %v1063
        %v1082 = vpop.permute.xlu0 %1081
        %v1084 = vadd.f32 %v1056, %v1067
        %v1085 = vadd.f32 %v1057, %v1072
        %v1086 = vadd.f32 %v1058, %v1077
        %v1087 = vadd.f32 %v1059, %v1082
        %v1088 = vstv %s520
        %v1089 = vadd.s32 %v546, %v1088
        %v1090 = vld [vmem:[%s11] sm:$0xff]
        %v1091 = vld [vmem:[%s11 + $0x8] sm:$0xff]
        %v1092 = vld [vmem:[%s11 + $0x10] sm:$0xff]
        %v1093 = vld [vmem:[%s11 + $0x18] sm:$0xff]
        %1095 = vset.pattern.permute.xlu0 0
        %1096 = vperm.xlu0 %1095, %v1090
        %v1097 = vpop.permute.xlu0 %1096
        %1100 = vset.pattern.permute.xlu0 0
        %1101 = vperm.xlu0 %1100, %v1091
        %v1102 = vpop.permute.xlu0 %1101
        %1105 = vset.pattern.permute.xlu0 0
        %1106 = vperm.xlu0 %1105, %v1092
        %v1107 = vpop.permute.xlu0 %1106
        %1110 = vset.pattern.permute.xlu0 0
        %1111 = vperm.xlu0 %1110, %v1093
        %v1112 = vpop.permute.xlu0 %1111
        %v1114 = vmul.f32 %v1084, %v1097
        %v1115 = vmul.f32 %v1085, %v1102
        %v1116 = vmul.f32 %v1086, %v1107
        %v1117 = vmul.f32 %v1087, %v1112
        %v1118 = vadd.f32 %v1114, %v1115
        %v1119 = vadd.f32 %v1118, %v1116
        %v1120 = vadd.f32 %v1119, %v1117
        %v1121 = vrot.slane %v1120, 4
        %v1122 = vadd.f32 %v1120, %v1121
        %v1123 = vrot.slane %v1122, 2
        %v1124 = vadd.f32 %v1122, %v1123
        %v1125 = vrot.slane %v1124, 1
        %v1126 = vadd.f32 %v1124, %v1125
        %vm1127 = vcmp.lt.s32.totalorder %v1089, %v552
        %v1128 = vsel %vm1127, 1, 0
        %v1129 = vcvt.s32.f32 %v1128
        %v1130 = vmul.f32 %v1129, %v1126
        %v1131 = vld [vmem:[#allocation4] sm:$0x1]
        %1133 = vset.pattern.permute.xlu0 0
        %1134 = vperm.xlu0 %1133, %v1131
        %v1135 = vpop.permute.xlu0 %1134
        %v1137 = vlaneseq
        %v1138 = vshrl.u32 %v1137, 7
        %v1139 = vsub.s32 0, %v1138
        %v1140 = vrot.slane %v1135, %v1139
        %v1141 = vadd.f32 %v1130, %v1140
        %1142 = vst [vmem:[%s507] sm:$0x1] %v1141
        %s1143 = sand.u32 %s323, 1
        %s1144 = scalar_lea.sflag [#allocation7], %s1143
        %s1145 = sand.u32 %s323, 1
        %s1146 = scalar_lea.vmem [#allocation6], %s1145
        // Predicated region
        $region110: #{tpu_custom_call.1} parent=104 // pred_check
          %p1147 = pneg %p333
        $region111: #{tpu_custom_call.1} parent=104 // pred_check_branch
          %1149 = sbr.rel (%p1147) target = $region113
        $region112: #{tpu_custom_call.1} parent=104 // pred_region
          %s1151 = ssub.s32 16, 16
          %1152 = vsyncadd %s1144, %s1151
          %s1153 = smul.addr %s39, 2
          %s1154 = sadd.s32 %s40, %s1153
          %s1155 = smul.addr %s1154, 16
          %s1156 = scalar_lea.hbm %s13, %s1155
          %s1158 = sshll.u32 %s1146, 4
          %s1159 = int_to_ptr.vmem [resolvable:$true] %s1158
          %1161 = dma.vmem_to_hbm [thread:$0]  %s1159, 16, %s1156, %s1144
        $region113: #{tpu_custom_call.1} parent=104 // pred_fallthru
          _
      $region105: #{tpu_custom_call.1} parent=5 // pred_fallthru
        _
      %p1162 = scmp.le.s32.totalorder 2, %s30
      // Predicated region
      $region114: #{tpu_custom_call.1} parent=5 // pred_check
        %p1163 = pneg %p1162
      $region115: #{tpu_custom_call.1} parent=5 // pred_check_branch
        %1165 = sbr.rel (%p1163) target = $region117
      $region116: #{tpu_custom_call.1} parent=5 // pred_region
        %s1166 = ssub.s32 %s30, 2
        // Predicated region
        $region118: #{tpu_custom_call.1} parent=116 // pred_check
          %p1167 = pneg %p339
        $region119: #{tpu_custom_call.1} parent=116 // pred_check_branch
          %1169 = sbr.rel (%p1167) target = $region121
        $region120: #{tpu_custom_call.1} parent=116 // pred_region
          %s1170 = sand.u32 %s324, 1
          %s1171 = scalar_lea.sflag [#allocation7], %s1170
          %s1172 = sand.u32 %s324, 1
          %s1173 = scalar_lea.vmem [#allocation6], %s1172
          %1174 = dma.done %s1171, 16
        $region121: #{tpu_custom_call.1} parent=116 // pred_fallthru
          _
      $region117: #{tpu_custom_call.1} parent=5 // pred_fallthru
        _
    $region6: #{tpu_custom_call.1} parent=1 // loop_footer
      %s34 = sadd.s32 1, %s30
    $region7: #{tpu_custom_call.1} parent=1 // loop_footer_branch
      %29 = sbr.rel target = $region3
    $region8: #{tpu_custom_call.1} parent=1 // loop_exit
      _
    %1175 = vsyncpa [#allocation7], 1
    %s1176 = scalar_lea.sflag [#allocation7], 1
    %1177 = vsyncpa %s1176, 1

</llo_original>
